<compile_context>
chip_gen: v5e
topology: v5e:2x2
jax: 0.10.0
libtpu: 0.0.40
codegen_flags: <defaults>
</compile_context>

<pallas_src>
import jax
import jax.numpy as jnp
from jax import lax
from jax.experimental import pallas as pl
from jax.experimental.pallas import tpu as pltpu

C1, C2 = 16, 32            # conv channel counts fixed by the module
MLP_H1, MLP_H2 = 128, 64   # MLP hidden sizes
CLS_H = 64                 # classifier hidden size

# Conservative scoped-VMEM budget for activations + weights: fits v7x's 64 MiB
# physical VMEM (with headroom for compiler scratch) and is far below the
# 128 MiB of v5e/v6e.
_VMEM_BUDGET = 40 * 1024 * 1024


def _round_up(x, m):
    return (x + m - 1) // m * m


def _cdiv(a, b):
    return -(-a // b)


def _hybrid_kernel(x_ref, we_ref, w2_ref, w3c_ref, wm2_ref, w3m_ref, w4_ref,
                   bias_ref, out_ref):
    f32, bf16 = jnp.float32, jnp.bfloat16
    F1 = we_ref.shape[1] - MLP_H1          # = 16 * L   (conv1 feature width)
    F2 = w2_ref.shape[1]                   # = 16 * L   (conv2 feature width)
    NCP = out_ref.shape[1]                 # lane-padded num_classes (>= 128)

    x = x_ref[...]                         # (TB, 2L) f32 = [x_seq | x_raw]

    # ---- fused entry layer: [conv1-as-banded-matmul | mlp Linear] in one MXU op
    y = jnp.dot(x.astype(bf16), we_ref[...], preferred_element_type=f32)
    y = jnp.maximum(y + bias_ref[0:1, :F1 + MLP_H1], 0.0)
    h1 = y[:, :F1]          # CNN branch  (lane-aligned split: F1 % 128 == 0)
    a1 = y[:, F1:]          # MLP branch  (128 lanes)

    # ---- MaxPool1d(2) #1: pooled values land on even lanes; odd lanes are dead
    # and multiply exactly-zero rows of w2 (pool select fused into the weights).
    # Lane wrap-around of roll only pollutes dead odd lanes, never another value.
    m1 = jnp.maximum(h1, pltpu.roll(h1, shift=F1 - 1, axis=1))

    # ---- Conv1d(16, 32, k=3, pad=1) + ReLU as one matmul on the pooled lanes
    h2 = jnp.dot(m1.astype(bf16), w2_ref[...], preferred_element_type=f32)
    h2 = jnp.maximum(h2 + bias_ref[1:2, :F2], 0.0)
    m2 = jnp.maximum(h2, pltpu.roll(h2, shift=F2 - 1, axis=1))   # MaxPool #2

    # ---- MLP second layer (Dropout(0.3) layers are identity at inference)
    a2 = jnp.dot(a1.astype(bf16), wm2_ref[...], preferred_element_type=f32)
    a2 = jnp.maximum(a2 + bias_ref[2:3, :MLP_H2], 0.0)

    # ---- classifier layer 1: concat(cnn_flat, mlp_out) @ W^T, decomposed
    z = (jnp.dot(m2.astype(bf16), w3c_ref[...], preferred_element_type=f32)
         + jnp.dot(a2.astype(bf16), w3m_ref[...], preferred_element_type=f32)
         + bias_ref[3:4, :CLS_H])
    z = jnp.maximum(z, 0.0)

    # ---- classifier layer 2, lane-padded to a dense 128-lane store.
    # Dropout(0.7) is identity at inference.
    # TODO(synk): training-mode MC ("Bayesian") dropout sampling not implemented.
    out_ref[...] = (jnp.dot(z.astype(bf16), w4_ref[...], preferred_element_type=f32)
                    + bias_ref[4:5, :NCP])


def hybrid_forward(x_raw, x_seq, params):
    f32, bf16 = jnp.float32, jnp.bfloat16
    B, D = x_raw.shape
    L = x_seq.shape[-1]
    assert L == D, "module uses the same length for x_raw and x_seq"
    # Lane alignment: F1/F2 = 16*L must be multiples of 128 so every matmul tile
    # and the h1/a1 split are lane-dense (matters most on v5e's 128-wide MXU).
    # TODO(synk): input_dim % 8 != 0 would need column padding to 128 instead.
    assert L % 8 == 0, "this kernel layout requires input_dim % 8 == 0"
    L2, L4 = L // 2, L // 4
    F1, F2 = C1 * L, C2 * L2               # both equal 16*L
    NC = params['cls2_w'].shape[0]
    NCP = _round_up(max(NC, 1), 128)       # lane-dense output width

    # ---------------- exact weight re-layout (runs once, in XLA) ----------------
    # conv1 as banded matmul: W1[l_in, c*L + l_out] = conv1_w[c, 0, l_in-l_out+1]
    a = jnp.arange(L)[:, None, None, None]              # l_in
    lo1 = jnp.arange(L)[None, None, :, None]            # l_out
    k1 = jnp.arange(3)[None, None, None, :]
    w1b = params['conv1_w'][:, 0, :][None, :, None, :]  # (1, C1, 1, 3)
    W1 = jnp.where(a == lo1 + k1 - 1, w1b, 0.0).sum(-1).reshape(L, F1)

    # fused entry weight: block-diag(conv1-band | mlp1) -> one (2L, F1+128) matmul
    We = jnp.zeros((2 * L, F1 + MLP_H1), f32)
    We = We.at[:L, :F1].set(W1)
    We = We.at[L:, F1:].set(params['mlp1_w'].T)

    # conv2 on pooled features, with the even-lane pool select fused into rows:
    # W2[c_in*L + 2*l_in, c_out*L2 + l_out] = conv2_w[c_out, c_in, l_in-l_out+1]
    g = jnp.arange(L)[None, :, None, None, None]         # lane offset in c_in block
    lo2 = jnp.arange(L2)[None, None, None, :, None]      # l_out
    k2 = jnp.arange(3)[None, None, None, None, :]
    li = lo2 + k2 - 1                                    # l_in (pooled domain)
    cond = (g == 2 * li) & (li >= 0) & (li < L2)
    w2b = jnp.transpose(params['conv2_w'], (1, 0, 2))[:, None, :, None, :]
    W2 = jnp.where(cond, w2b, 0.0).sum(-1).reshape(C1 * L, C2 * L2)

    # classifier CNN part (torch channel-major .view order), scattered onto the
    # even pooled lanes of h2 so no in-kernel gather/concat is needed.
    W3c_small = params['cls1_w'][:, :C2 * L4].T          # (C2*L4, 64)
    rows = (jnp.arange(C2)[:, None] * L2 + 2 * jnp.arange(L4)[None, :]).reshape(-1)
    W3c = jnp.zeros((F2, CLS_H), f32).at[rows].set(W3c_small)

    Wm2 = params['mlp2_w'].T                             # (128, 64)
    W3m = params['cls1_w'][:, C2 * L4:].T                # (64, 64)
    W4 = jnp.zeros((CLS_H, NCP), f32).at[:, :NC].set(params['cls2_w'].T)

    # pack all biases into one lane-aligned f32 buffer (single DMA descriptor)
    BW = max(F1 + MLP_H1, F2, NCP)
    bias = jnp.zeros((8, BW), f32)
    bias = bias.at[0, :F1].set(jnp.repeat(params['conv1_b'], L))
    bias = bias.at[0, F1:F1 + MLP_H1].set(params['mlp1_b'])
    bias = bias.at[1, :F2].set(jnp.repeat(params['conv2_b'], L2))
    bias = bias.at[2, :MLP_H2].set(params['mlp2_b'])
    bias = bias.at[3, :CLS_H].set(params['cls1_b'])
    bias = bias.at[4, :NC].set(params['cls2_b'])

    # bf16 matmul operands on the MXU (f32 accumulation); bias stays f32 (VPU).
    weights = [w.astype(bf16) for w in (We, W2, W3c, Wm2, W3m, W4)] + [bias]
    weight_bytes = sum(int(w.size) * w.dtype.itemsize for w in weights)

    # -------- batch blocking: TB from a VMEM budget, >= 2 (even) grid steps ----
    f32_rows = (2 * (2 * L)            # double-buffered input block
                + (F1 + MLP_H1)        # fused entry activation y
                + 2 * F1 + MLP_H1      # h1, m1, a1
                + 2 * F2               # h2, m2
                + 2 * MLP_H2 + CLS_H   # a2 (pre/post), z
                + 2 * NCP)             # double-buffered output block
    bf16_rows = 2 * L + F1 + MLP_H1 + F2 + MLP_H2 + CLS_H   # matmul-input casts
    per_row = 4 * f32_rows + 2 * bf16_rows
    # assume weights may be double-buffered when budgeting (fallback path)
    tb_cap = max(8, min(1024, (_VMEM_BUDGET - 2 * weight_bytes) // per_row // 8 * 8))

    if B <= 16:
        nsteps = 1
        TB = _round_up(max(B, 8), 8)
    else:
        # >= 2 grid steps (even count) so the batch axis shards evenly across
        # v7x's two TensorCores and input DMA pipelines against compute.
        nsteps = _round_up(max(2, _cdiv(B, tb_cap)), 2)
        TB = _round_up(_cdiv(B, nsteps), 8)
    B_pad = nsteps * TB

    x_in = jnp.concatenate(
        [x_seq.reshape(B, L).astype(f32), x_raw.astype(f32)], axis=1)   # (B, 2L)
    if B_pad != B:
        x_in = jnp.pad(x_in, ((0, B_pad - B), (0, 0)))

    vmem_limit = int(min(64 * 1024 * 1024,
                         max(32 * 1024 * 1024,
                             2 * weight_bytes + 2 * TB * per_row)))

    flops = 2 * B_pad * ((2 * L) * (F1 + MLP_H1) + F1 * F2 + MLP_H1 * MLP_H2
                         + F2 * CLS_H + MLP_H2 * CLS_H + CLS_H * NCP)
    bytes_accessed = 4 * B_pad * (2 * L + NCP) + weight_bytes

    def call(single_buffer_weights):
        if single_buffer_weights:
            # grid-invariant operands -> one VMEM buffer is enough
            def wspec(shape):
                return pl.BlockSpec(shape, lambda b: (0, 0),
                                    pipeline_mode=pl.Buffered(1))
        else:
            def wspec(shape):
                return pl.BlockSpec(shape, lambda b: (0, 0))
        in_specs = ([pl.BlockSpec((TB, 2 * L), lambda b: (b, 0))]
                    + [wspec(w.shape) for w in weights])
        return pl.pallas_call(
            _hybrid_kernel,
            out_shape=jax.ShapeDtypeStruct((B_pad, NCP), f32),
            grid=(nsteps,),
            in_specs=in_specs,
            out_specs=pl.BlockSpec((TB, NCP), lambda b: (b, 0)),
            compiler_params=pltpu.CompilerParams(
                dimension_semantics=("parallel",),
                vmem_limit_bytes=vmem_limit),
            cost_estimate=pl.CostEstimate(flops=int(flops), transcendentals=0,
                                          bytes_accessed=int(bytes_accessed)),
        )(x_in, *weights)

    try:
        out = call(True)
    except Exception:
        # Older JAX versions may reject single-buffered (Buffered(1)) specs;
        # fall back to default double-buffering (VMEM budget already covers it).
        out = call(False)
    return out[:B, :NC]


def make_params(key, input_dim, num_classes=5):
    l4 = input_dim // 4
    ks = jax.random.split(key, 12)

    def w(k, shape, scale=0.1):
        return jax.random.normal(k, shape, jnp.float32) * scale

    return {
        'conv1_w': w(ks[0], (16, 1, 3)),
        'conv1_b': w(ks[1], (16,)),
        'conv2_w': w(ks[2], (32, 16, 3)),
        'conv2_b': w(ks[3], (32,)),
        'mlp1_w': w(ks[4], (128, input_dim)),
        'mlp1_b': w(ks[5], (128,)),
        'mlp2_w': w(ks[6], (64, 128)),
        'mlp2_b': w(ks[7], (64,)),
        'cls1_w': w(ks[8], (64, 32 * l4 + 64)),
        'cls1_b': w(ks[9], (64,)),
        'cls2_w': w(ks[10], (num_classes, 64)),
        'cls2_b': w(ks[11], (64,))[:num_classes] * 0 + w(ks[11], (num_classes,)),
    }


def reference_forward(x_raw, x_seq, p, mxu_dtype=jnp.float32):
    """Pure-JAX replica of the PyTorch eval-mode forward.

    mxu_dtype=bfloat16 mirrors the kernel numerics (bf16 matmul inputs,
    f32 accumulation) for a tight check; float32 is the PyTorch-equivalent.
    """
    f32 = jnp.float32
    prec = lax.Precision.HIGHEST if mxu_dtype == jnp.float32 else lax.Precision.DEFAULT

    def mm(a, b):
        return jnp.dot(a.astype(mxu_dtype), b.astype(mxu_dtype),
                       preferred_element_type=f32, precision=prec)

    def conv1d(x, w, b):
        y = lax.conv_general_dilated(
            x.astype(mxu_dtype), w.astype(mxu_dtype), window_strides=(1,),
            padding=((1, 1),), dimension_numbers=('NCH', 'OIH', 'NCH'),
            preferred_element_type=f32, precision=prec)
        return y + b[None, :, None]

    h = jax.nn.relu(conv1d(x_seq, p['conv1_w'], p['conv1_b']))
    Bh, C, Lh = h.shape
    h = h.reshape(Bh, C, Lh // 2, 2).max(axis=-1)
    h = jax.nn.relu(conv1d(h, p['conv2_w'], p['conv2_b']))
    Bh, C, Lh = h.shape
    h = h.reshape(Bh, C, Lh // 2, 2).max(axis=-1)
    cnn_flat = h.reshape(Bh, -1)
    m = jax.nn.relu(mm(x_raw, p['mlp1_w'].T) + p['mlp1_b'])
    m = jax.nn.relu(mm(m, p['mlp2_w'].T) + p['mlp2_b'])
    comb = jnp.concatenate([cnn_flat, m], axis=1)
    z = jax.nn.relu(mm(comb, p['cls1_w'].T) + p['cls1_b'])
    return mm(z, p['cls2_w'].T) + p['cls2_b']


if __name__ == "__main__":
    key = jax.random.PRNGKey(0)
    k_p, k_raw, k_seq = jax.random.split(key, 3)
    B, D, NC = 2, 16, 5                      # input_dim = 16, num_classes = 5

    params = make_params(k_p, D, NC)
    x_raw = jax.random.normal(k_raw, (B, D), jnp.float32)
    x_seq = jax.random.normal(k_seq, (B, 1, D), jnp.float32)   # NCW like PyTorch

    out = jax.block_until_ready(hybrid_forward(x_raw, x_seq, params))
    assert out.shape == (B, NC)

    # Tight check against a reference that mirrors the kernel's numerics
    # (bf16 matmul inputs, f32 accumulation): only summation order differs.
    ref_bf16 = reference_forward(x_raw, x_seq, params, mxu_dtype=jnp.bfloat16)
    if not jnp.allclose(out, ref_bf16, rtol=5e-3, atol=5e-3):
        raise AssertionError(
            "mismatch vs bf16-matched reference, max abs diff = "
            f"{jnp.max(jnp.abs(out - ref_bf16))}")

    # Sanity check against the full-f32 (PyTorch-equivalent) reference; the
    # tolerance is bounded by bf16 input rounding, not algorithmic error.
    ref_f32 = reference_forward(x_raw, x_seq, params, mxu_dtype=jnp.float32)
    if not jnp.allclose(out, ref_f32, rtol=5e-2, atol=5e-2):
        raise AssertionError(
            "mismatch vs f32 reference, max abs diff = "
            f"{jnp.max(jnp.abs(out - ref_f32))}")

    print("KERNEL_OK")
</pallas_src>

<mosaic_0001>
module attributes {stable_mosaic.version = 11 : i64} {
  func.func @_hybrid_kernel(%arg0: i32, %arg1: memref<8x32xf32, #tpu.memory_space<vmem>>, %arg2: memref<32x384xbf16, #tpu.memory_space<vmem>>, %arg3: memref<256x256xbf16, #tpu.memory_space<vmem>>, %arg4: memref<256x64xbf16, #tpu.memory_space<vmem>>, %arg5: memref<128x64xbf16, #tpu.memory_space<vmem>>, %arg6: memref<64x64xbf16, #tpu.memory_space<vmem>>, %arg7: memref<64x128xbf16, #tpu.memory_space<vmem>>, %arg8: memref<8x384xf32, #tpu.memory_space<vmem>>, %arg9: memref<8x128xf32, #tpu.memory_space<vmem>>) attributes {dimension_semantics = [#tpu.dimension_semantics<parallel>], iteration_bounds = array<i64: 1>, scalar_prefetch = 0 : i64, scratch_operands = 0 : i64, tpu.core_type = #tpu.core_type<tc>, window_params = [{transform_indices = @transform_0, window_bounds = array<i64: 8, 32>}, {pipeline_mode = #tpu.pipeline_mode<synchronous>, transform_indices = @transform_1, window_bounds = array<i64: 32, 384>}, {pipeline_mode = #tpu.pipeline_mode<synchronous>, transform_indices = @transform_2, window_bounds = array<i64: 256, 256>}, {pipeline_mode = #tpu.pipeline_mode<synchronous>, transform_indices = @transform_3, window_bounds = array<i64: 256, 64>}, {pipeline_mode = #tpu.pipeline_mode<synchronous>, transform_indices = @transform_4, window_bounds = array<i64: 128, 64>}, {pipeline_mode = #tpu.pipeline_mode<synchronous>, transform_indices = @transform_5, window_bounds = array<i64: 64, 64>}, {pipeline_mode = #tpu.pipeline_mode<synchronous>, transform_indices = @transform_6, window_bounds = array<i64: 64, 128>}, {pipeline_mode = #tpu.pipeline_mode<synchronous>, transform_indices = @transform_7, window_bounds = array<i64: 8, 384>}, {transform_indices = @transform_8, window_bounds = array<i64: 8, 128>}]} {
    %c0 = arith.constant 0 : index
    %c0_0 = arith.constant 0 : index
    %0 = vector.load %arg1[%c0, %c0_0] : memref<8x32xf32, #tpu.memory_space<vmem>>, vector<8x32xf32>
    %1 = arith.truncf %0 : vector<8x32xf32> to vector<8x32xbf16>
    %c0_1 = arith.constant 0 : index
    %c0_2 = arith.constant 0 : index
    %2 = vector.load %arg2[%c0_1, %c0_2] : memref<32x384xbf16, #tpu.memory_space<vmem>>, vector<32x384xbf16>
    %cst = arith.constant dense<0.000000e+00> : vector<8x384xf32>
    %3 = tpu.matmul %1, %2, %cst {dimension_numbers = #tpu.dot_dimension_numbers<[1], [0], [0], [1], [0, 0, 1, 1], [], []>} : vector<8x32xbf16>, vector<32x384xbf16>, vector<8x384xf32> -> vector<8x384xf32>
    %c0_3 = arith.constant 0 : index
    %c0_4 = arith.constant 0 : index
    %4 = vector.load %arg8[%c0_3, %c0_4] : memref<8x384xf32, #tpu.memory_space<vmem>>, vector<1x384xf32>
    %5 = vector.broadcast %4 : vector<1x384xf32> to vector<8x384xf32>
    %6 = arith.addf %3, %5 : vector<8x384xf32>
    %cst_5 = arith.constant 0.000000e+00 : f32
    %7 = vector.broadcast %cst_5 : f32 to vector<8x384xf32>
    %8 = arith.maximumf %6, %7 : vector<8x384xf32>
    %9 = vector.extract_strided_slice %8 {offsets = [0, 0], sizes = [8, 256], strides = [1, 1]} : vector<8x384xf32> to vector<8x256xf32>
    %10 = vector.extract_strided_slice %8 {offsets = [0, 256], sizes = [8, 128], strides = [1, 1]} : vector<8x384xf32> to vector<8x128xf32>
    %c255_i32 = arith.constant 255 : i32
    %11 = tpu.dynamic_rotate %9 by %c255_i32 dim 1 : vector<8x256xf32>, i32 -> vector<8x256xf32>
    %12 = arith.maximumf %9, %11 : vector<8x256xf32>
    %13 = arith.truncf %12 : vector<8x256xf32> to vector<8x256xbf16>
    %c0_6 = arith.constant 0 : index
    %c0_7 = arith.constant 0 : index
    %14 = vector.load %arg3[%c0_6, %c0_7] : memref<256x256xbf16, #tpu.memory_space<vmem>>, vector<256x256xbf16>
    %cst_8 = arith.constant dense<0.000000e+00> : vector<8x256xf32>
    %15 = tpu.matmul %13, %14, %cst_8 {dimension_numbers = #tpu.dot_dimension_numbers<[1], [0], [0], [1], [0, 0, 1, 1], [], []>} : vector<8x256xbf16>, vector<256x256xbf16>, vector<8x256xf32> -> vector<8x256xf32>
    %c1 = arith.constant 1 : index
    %c0_9 = arith.constant 0 : index
    %16 = vector.load %arg8[%c1, %c0_9] : memref<8x384xf32, #tpu.memory_space<vmem>>, vector<1x256xf32>
    %17 = vector.broadcast %16 : vector<1x256xf32> to vector<8x256xf32>
    %18 = arith.addf %15, %17 : vector<8x256xf32>
    %cst_10 = arith.constant 0.000000e+00 : f32
    %19 = vector.broadcast %cst_10 : f32 to vector<8x256xf32>
    %20 = arith.maximumf %18, %19 : vector<8x256xf32>
    %c255_i32_11 = arith.constant 255 : i32
    %21 = tpu.dynamic_rotate %20 by %c255_i32_11 dim 1 : vector<8x256xf32>, i32 -> vector<8x256xf32>
    %22 = arith.maximumf %20, %21 : vector<8x256xf32>
    %23 = arith.truncf %10 : vector<8x128xf32> to vector<8x128xbf16>
    %c0_12 = arith.constant 0 : index
    %c0_13 = arith.constant 0 : index
    %24 = vector.load %arg5[%c0_12, %c0_13] : memref<128x64xbf16, #tpu.memory_space<vmem>>, vector<128x64xbf16>
    %cst_14 = arith.constant dense<0.000000e+00> : vector<8x64xf32>
    %25 = tpu.matmul %23, %24, %cst_14 {dimension_numbers = #tpu.dot_dimension_numbers<[1], [0], [0], [1], [0, 0, 1, 1], [], []>} : vector<8x128xbf16>, vector<128x64xbf16>, vector<8x64xf32> -> vector<8x64xf32>
    %c2 = arith.constant 2 : index
    %c0_15 = arith.constant 0 : index
    %26 = vector.load %arg8[%c2, %c0_15] : memref<8x384xf32, #tpu.memory_space<vmem>>, vector<1x64xf32>
    %27 = vector.broadcast %26 : vector<1x64xf32> to vector<8x64xf32>
    %28 = arith.addf %25, %27 : vector<8x64xf32>
    %cst_16 = arith.constant 0.000000e+00 : f32
    %29 = vector.broadcast %cst_16 : f32 to vector<8x64xf32>
    %30 = arith.maximumf %28, %29 : vector<8x64xf32>
    %31 = arith.truncf %22 : vector<8x256xf32> to vector<8x256xbf16>
    %c0_17 = arith.constant 0 : index
    %c0_18 = arith.constant 0 : index
    %32 = vector.load %arg4[%c0_17, %c0_18] : memref<256x64xbf16, #tpu.memory_space<vmem>>, vector<256x64xbf16>
    %cst_19 = arith.constant dense<0.000000e+00> : vector<8x64xf32>
    %33 = tpu.matmul %31, %32, %cst_19 {dimension_numbers = #tpu.dot_dimension_numbers<[1], [0], [0], [1], [0, 0, 1, 1], [], []>} : vector<8x256xbf16>, vector<256x64xbf16>, vector<8x64xf32> -> vector<8x64xf32>
    %34 = arith.truncf %30 : vector<8x64xf32> to vector<8x64xbf16>
    %c0_20 = arith.constant 0 : index
    %c0_21 = arith.constant 0 : index
    %35 = vector.load %arg6[%c0_20, %c0_21] : memref<64x64xbf16, #tpu.memory_space<vmem>>, vector<64x64xbf16>
    %cst_22 = arith.constant dense<0.000000e+00> : vector<8x64xf32>
    %36 = tpu.matmul %34, %35, %cst_22 {dimension_numbers = #tpu.dot_dimension_numbers<[1], [0], [0], [1], [0, 0, 1, 1], [], []>} : vector<8x64xbf16>, vector<64x64xbf16>, vector<8x64xf32> -> vector<8x64xf32>
    %37 = arith.addf %33, %36 : vector<8x64xf32>
    %c3 = arith.constant 3 : index
    %c0_23 = arith.constant 0 : index
    %38 = vector.load %arg8[%c3, %c0_23] : memref<8x384xf32, #tpu.memory_space<vmem>>, vector<1x64xf32>
    %39 = vector.broadcast %38 : vector<1x64xf32> to vector<8x64xf32>
    %40 = arith.addf %37, %39 : vector<8x64xf32>
    %cst_24 = arith.constant 0.000000e+00 : f32
    %41 = vector.broadcast %cst_24 : f32 to vector<8x64xf32>
    %42 = arith.maximumf %40, %41 : vector<8x64xf32>
    %43 = arith.truncf %42 : vector<8x64xf32> to vector<8x64xbf16>
    %c0_25 = arith.constant 0 : index
    %c0_26 = arith.constant 0 : index
    %44 = vector.load %arg7[%c0_25, %c0_26] : memref<64x128xbf16, #tpu.memory_space<vmem>>, vector<64x128xbf16>
    %cst_27 = arith.constant dense<0.000000e+00> : vector<8x128xf32>
    %45 = tpu.matmul %43, %44, %cst_27 {dimension_numbers = #tpu.dot_dimension_numbers<[1], [0], [0], [1], [0, 0, 1, 1], [], []>} : vector<8x64xbf16>, vector<64x128xbf16>, vector<8x128xf32> -> vector<8x128xf32>
    %c4 = arith.constant 4 : index
    %c0_28 = arith.constant 0 : index
    %46 = vector.load %arg8[%c4, %c0_28] : memref<8x384xf32, #tpu.memory_space<vmem>>, vector<1x128xf32>
    %47 = vector.broadcast %46 : vector<1x128xf32> to vector<8x128xf32>
    %48 = arith.addf %45, %47 : vector<8x128xf32>
    %c0_29 = arith.constant 0 : index
    %c0_30 = arith.constant 0 : index
    %49 = vector.load %arg9[%c0_29, %c0_30] : memref<8x128xf32, #tpu.memory_space<vmem>>, vector<8x128xf32>
    tpu.vector_store %arg9[%c0_29, %c0_30], %48 {strides = array<i32>} : memref<8x128xf32, #tpu.memory_space<vmem>>, vector<8x128xf32>,
    return
  }
  func.func @transform_0(%arg0: i32) -> (i32, i32) {
    %c0_i32 = arith.constant 0 : i32
    %c0_i32_0 = arith.constant 0 : i32
    return %arg0, %c0_i32 : i32, i32
  }
  func.func @transform_1(%arg0: i32) -> (i32, i32) {
    %c0_i32 = arith.constant 0 : i32
    %c0_i32_0 = arith.constant 0 : i32
    %c0_i32_1 = arith.constant 0 : i32
    return %c0_i32, %c0_i32_0 : i32, i32
  }
  func.func @transform_2(%arg0: i32) -> (i32, i32) {
    %c0_i32 = arith.constant 0 : i32
    %c0_i32_0 = arith.constant 0 : i32
    %c0_i32_1 = arith.constant 0 : i32
    return %c0_i32, %c0_i32_0 : i32, i32
  }
  func.func @transform_3(%arg0: i32) -> (i32, i32) {
    %c0_i32 = arith.constant 0 : i32
    %c0_i32_0 = arith.constant 0 : i32
    %c0_i32_1 = arith.constant 0 : i32
    return %c0_i32, %c0_i32_0 : i32, i32
  }
  func.func @transform_4(%arg0: i32) -> (i32, i32) {
    %c0_i32 = arith.constant 0 : i32
    %c0_i32_0 = arith.constant 0 : i32
    %c0_i32_1 = arith.constant 0 : i32
    return %c0_i32, %c0_i32_0 : i32, i32
  }
  func.func @transform_5(%arg0: i32) -> (i32, i32) {
    %c0_i32 = arith.constant 0 : i32
    %c0_i32_0 = arith.constant 0 : i32
    %c0_i32_1 = arith.constant 0 : i32
    return %c0_i32, %c0_i32_0 : i32, i32
  }
  func.func @transform_6(%arg0: i32) -> (i32, i32) {
    %c0_i32 = arith.constant 0 : i32
    %c0_i32_0 = arith.constant 0 : i32
    %c0_i32_1 = arith.constant 0 : i32
    return %c0_i32, %c0_i32_0 : i32, i32
  }
  func.func @transform_7(%arg0: i32) -> (i32, i32) {
    %c0_i32 = arith.constant 0 : i32
    %c0_i32_0 = arith.constant 0 : i32
    %c0_i32_1 = arith.constant 0 : i32
    return %c0_i32, %c0_i32_0 : i32, i32
  }
  func.func @transform_8(%arg0: i32) -> (i32, i32) {
    %c0_i32 = arith.constant 0 : i32
    %c0_i32_0 = arith.constant 0 : i32
    return %arg0, %c0_i32 : i32, i32
  }
}

module attributes {stable_mosaic.version = 11 : i64} {
  func.func @_hybrid_kernel(%arg0: i32, %arg1: memref<8x32xf32, #tpu.memory_space<vmem>>, %arg2: memref<32x384xbf16, #tpu.memory_space<vmem>>, %arg3: memref<256x256xbf16, #tpu.memory_space<vmem>>, %arg4: memref<256x64xbf16, #tpu.memory_space<vmem>>, %arg5: memref<128x64xbf16, #tpu.memory_space<vmem>>, %arg6: memref<64x64xbf16, #tpu.memory_space<vmem>>, %arg7: memref<64x128xbf16, #tpu.memory_space<vmem>>, %arg8: memref<8x384xf32, #tpu.memory_space<vmem>>, %arg9: memref<8x128xf32, #tpu.memory_space<vmem>>) attributes {dimension_semantics = [#tpu.dimension_semantics<parallel>], iteration_bounds = array<i64: 1>, scalar_prefetch = 0 : i64, scratch_operands = 0 : i64, tpu.core_type = #tpu.core_type<tc>, window_params = [{transform_indices = @transform_0, window_bounds = array<i64: 8, 32>}, {pipeline_mode = #tpu.pipeline_mode<synchronous>, transform_indices = @transform_1, window_bounds = array<i64: 32, 384>}, {pipeline_mode = #tpu.pipeline_mode<synchronous>, transform_indices = @transform_2, window_bounds = array<i64: 256, 256>}, {pipeline_mode = #tpu.pipeline_mode<synchronous>, transform_indices = @transform_3, window_bounds = array<i64: 256, 64>}, {pipeline_mode = #tpu.pipeline_mode<synchronous>, transform_indices = @transform_4, window_bounds = array<i64: 128, 64>}, {pipeline_mode = #tpu.pipeline_mode<synchronous>, transform_indices = @transform_5, window_bounds = array<i64: 64, 64>}, {pipeline_mode = #tpu.pipeline_mode<synchronous>, transform_indices = @transform_6, window_bounds = array<i64: 64, 128>}, {pipeline_mode = #tpu.pipeline_mode<synchronous>, transform_indices = @transform_7, window_bounds = array<i64: 8, 384>}, {transform_indices = @transform_8, window_bounds = array<i64: 8, 128>}]} {
    %c0 = arith.constant 0 : index
    %c0_0 = arith.constant 0 : index
    %0 = vector.load %arg1[%c0, %c0_0] : memref<8x32xf32, #tpu.memory_space<vmem>>, vector<8x32xf32>
    %1 = arith.truncf %0 : vector<8x32xf32> to vector<8x32xbf16>
    %c0_1 = arith.constant 0 : index
    %c0_2 = arith.constant 0 : index
    %2 = vector.load %arg2[%c0_1, %c0_2] : memref<32x384xbf16, #tpu.memory_space<vmem>>, vector<32x384xbf16>
    %cst = arith.constant dense<0.000000e+00> : vector<8x384xf32>
    %3 = tpu.matmul %1, %2, %cst {dimension_numbers = #tpu.dot_dimension_numbers<[1], [0], [0], [1], [0, 0, 1, 1], [], []>} : vector<8x32xbf16>, vector<32x384xbf16>, vector<8x384xf32> -> vector<8x384xf32>
    %c0_3 = arith.constant 0 : index
    %c0_4 = arith.constant 0 : index
    %4 = vector.load %arg8[%c0_3, %c0_4] : memref<8x384xf32, #tpu.memory_space<vmem>>, vector<1x384xf32>
    %5 = vector.broadcast %4 : vector<1x384xf32> to vector<8x384xf32>
    %6 = arith.addf %3, %5 : vector<8x384xf32>
    %cst_5 = arith.constant 0.000000e+00 : f32
    %7 = vector.broadcast %cst_5 : f32 to vector<8x384xf32>
    %8 = arith.maximumf %6, %7 : vector<8x384xf32>
    %9 = vector.extract_strided_slice %8 {offsets = [0, 0], sizes = [8, 256], strides = [1, 1]} : vector<8x384xf32> to vector<8x256xf32>
    %10 = vector.extract_strided_slice %8 {offsets = [0, 256], sizes = [8, 128], strides = [1, 1]} : vector<8x384xf32> to vector<8x128xf32>
    %c255_i32 = arith.constant 255 : i32
    %11 = tpu.dynamic_rotate %9 by %c255_i32 dim 1 : vector<8x256xf32>, i32 -> vector<8x256xf32>
    %12 = arith.maximumf %9, %11 : vector<8x256xf32>
    %13 = arith.truncf %12 : vector<8x256xf32> to vector<8x256xbf16>
    %c0_6 = arith.constant 0 : index
    %c0_7 = arith.constant 0 : index
    %14 = vector.load %arg3[%c0_6, %c0_7] : memref<256x256xbf16, #tpu.memory_space<vmem>>, vector<256x256xbf16>
    %cst_8 = arith.constant dense<0.000000e+00> : vector<8x256xf32>
    %15 = tpu.matmul %13, %14, %cst_8 {dimension_numbers = #tpu.dot_dimension_numbers<[1], [0], [0], [1], [0, 0, 1, 1], [], []>} : vector<8x256xbf16>, vector<256x256xbf16>, vector<8x256xf32> -> vector<8x256xf32>
    %c1 = arith.constant 1 : index
    %c0_9 = arith.constant 0 : index
    %16 = vector.load %arg8[%c1, %c0_9] : memref<8x384xf32, #tpu.memory_space<vmem>>, vector<1x256xf32>
    %17 = vector.broadcast %16 : vector<1x256xf32> to vector<8x256xf32>
    %18 = arith.addf %15, %17 : vector<8x256xf32>
    %cst_10 = arith.constant 0.000000e+00 : f32
    %19 = vector.broadcast %cst_10 : f32 to vector<8x256xf32>
    %20 = arith.maximumf %18, %19 : vector<8x256xf32>
    %c255_i32_11 = arith.constant 255 : i32
    %21 = tpu.dynamic_rotate %20 by %c255_i32_11 dim 1 : vector<8x256xf32>, i32 -> vector<8x256xf32>
    %22 = arith.maximumf %20, %21 : vector<8x256xf32>
    %23 = arith.truncf %10 : vector<8x128xf32> to vector<8x128xbf16>
    %c0_12 = arith.constant 0 : index
    %c0_13 = arith.constant 0 : index
    %24 = vector.load %arg5[%c0_12, %c0_13] : memref<128x64xbf16, #tpu.memory_space<vmem>>, vector<128x64xbf16>
    %cst_14 = arith.constant dense<0.000000e+00> : vector<8x64xf32>
    %25 = tpu.matmul %23, %24, %cst_14 {dimension_numbers = #tpu.dot_dimension_numbers<[1], [0], [0], [1], [0, 0, 1, 1], [], []>} : vector<8x128xbf16>, vector<128x64xbf16>, vector<8x64xf32> -> vector<8x64xf32>
    %c2 = arith.constant 2 : index
    %c0_15 = arith.constant 0 : index
    %26 = vector.load %arg8[%c2, %c0_15] : memref<8x384xf32, #tpu.memory_space<vmem>>, vector<1x64xf32>
    %27 = vector.broadcast %26 : vector<1x64xf32> to vector<8x64xf32>
    %28 = arith.addf %25, %27 : vector<8x64xf32>
    %cst_16 = arith.constant 0.000000e+00 : f32
    %29 = vector.broadcast %cst_16 : f32 to vector<8x64xf32>
    %30 = arith.maximumf %28, %29 : vector<8x64xf32>
    %31 = arith.truncf %22 : vector<8x256xf32> to vector<8x256xbf16>
    %c0_17 = arith.constant 0 : index
    %c0_18 = arith.constant 0 : index
    %32 = vector.load %arg4[%c0_17, %c0_18] : memref<256x64xbf16, #tpu.memory_space<vmem>>, vector<256x64xbf16>
    %cst_19 = arith.constant dense<0.000000e+00> : vector<8x64xf32>
    %33 = tpu.matmul %31, %32, %cst_19 {dimension_numbers = #tpu.dot_dimension_numbers<[1], [0], [0], [1], [0, 0, 1, 1], [], []>} : vector<8x256xbf16>, vector<256x64xbf16>, vector<8x64xf32> -> vector<8x64xf32>
    %34 = arith.truncf %30 : vector<8x64xf32> to vector<8x64xbf16>
    %c0_20 = arith.constant 0 : index
    %c0_21 = arith.constant 0 : index
    %35 = vector.load %arg6[%c0_20, %c0_21] : memref<64x64xbf16, #tpu.memory_space<vmem>>, vector<64x64xbf16>
    %cst_22 = arith.constant dense<0.000000e+00> : vector<8x64xf32>
    %36 = tpu.matmul %34, %35, %cst_22 {dimension_numbers = #tpu.dot_dimension_numbers<[1], [0], [0], [1], [0, 0, 1, 1], [], []>} : vector<8x64xbf16>, vector<64x64xbf16>, vector<8x64xf32> -> vector<8x64xf32>
    %37 = arith.addf %33, %36 : vector<8x64xf32>
    %c3 = arith.constant 3 : index
    %c0_23 = arith.constant 0 : index
    %38 = vector.load %arg8[%c3, %c0_23] : memref<8x384xf32, #tpu.memory_space<vmem>>, vector<1x64xf32>
    %39 = vector.broadcast %38 : vector<1x64xf32> to vector<8x64xf32>
    %40 = arith.addf %37, %39 : vector<8x64xf32>
    %cst_24 = arith.constant 0.000000e+00 : f32
    %41 = vector.broadcast %cst_24 : f32 to vector<8x64xf32>
    %42 = arith.maximumf %40, %41 : vector<8x64xf32>
    %43 = arith.truncf %42 : vector<8x64xf32> to vector<8x64xbf16>
    %c0_25 = arith.constant 0 : index
    %c0_26 = arith.constant 0 : index
    %44 = vector.load %arg7[%c0_25, %c0_26] : memref<64x128xbf16, #tpu.memory_space<vmem>>, vector<64x128xbf16>
    %cst_27 = arith.constant dense<0.000000e+00> : vector<8x128xf32>
    %45 = tpu.matmul %43, %44, %cst_27 {dimension_numbers = #tpu.dot_dimension_numbers<[1], [0], [0], [1], [0, 0, 1, 1], [], []>} : vector<8x64xbf16>, vector<64x128xbf16>, vector<8x128xf32> -> vector<8x128xf32>
    %c4 = arith.constant 4 : index
    %c0_28 = arith.constant 0 : index
    %46 = vector.load %arg8[%c4, %c0_28] : memref<8x384xf32, #tpu.memory_space<vmem>>, vector<1x128xf32>
    %47 = vector.broadcast %46 : vector<1x128xf32> to vector<8x128xf32>
    %48 = arith.addf %45, %47 : vector<8x128xf32>
    %c0_29 = arith.constant 0 : index
    %c0_30 = arith.constant 0 : index
    %49 = vector.load %arg9[%c0_29, %c0_30] : memref<8x128xf32, #tpu.memory_space<vmem>>, vector<8x128xf32>
    tpu.vector_store %arg9[%c0_29, %c0_30], %48 {strides = array<i32>} : memref<8x128xf32, #tpu.memory_space<vmem>>, vector<8x128xf32>,
    return
  }
  func.func @transform_0(%arg0: i32) -> (i32, i32) {
    %c0_i32 = arith.constant 0 : i32
    %c0_i32_0 = arith.constant 0 : i32
    return %arg0, %c0_i32 : i32, i32
  }
  func.func @transform_1(%arg0: i32) -> (i32, i32) {
    %c0_i32 = arith.constant 0 : i32
    %c0_i32_0 = arith.constant 0 : i32
    %c0_i32_1 = arith.constant 0 : i32
    return %c0_i32, %c0_i32_0 : i32, i32
  }
  func.func @transform_2(%arg0: i32) -> (i32, i32) {
    %c0_i32 = arith.constant 0 : i32
    %c0_i32_0 = arith.constant 0 : i32
    %c0_i32_1 = arith.constant 0 : i32
    return %c0_i32, %c0_i32_0 : i32, i32
  }
  func.func @transform_3(%arg0: i32) -> (i32, i32) {
    %c0_i32 = arith.constant 0 : i32
    %c0_i32_0 = arith.constant 0 : i32
    %c0_i32_1 = arith.constant 0 : i32
    return %c0_i32, %c0_i32_0 : i32, i32
  }
  func.func @transform_4(%arg0: i32) -> (i32, i32) {
    %c0_i32 = arith.constant 0 : i32
    %c0_i32_0 = arith.constant 0 : i32
    %c0_i32_1 = arith.constant 0 : i32
    return %c0_i32, %c0_i32_0 : i32, i32
  }
  func.func @transform_5(%arg0: i32) -> (i32, i32) {
    %c0_i32 = arith.constant 0 : i32
    %c0_i32_0 = arith.constant 0 : i32
    %c0_i32_1 = arith.constant 0 : i32
    return %c0_i32, %c0_i32_0 : i32, i32
  }
  func.func @transform_6(%arg0: i32) -> (i32, i32) {
    %c0_i32 = arith.constant 0 : i32
    %c0_i32_0 = arith.constant 0 : i32
    %c0_i32_1 = arith.constant 0 : i32
    return %c0_i32, %c0_i32_0 : i32, i32
  }
  func.func @transform_7(%arg0: i32) -> (i32, i32) {
    %c0_i32 = arith.constant 0 : i32
    %c0_i32_0 = arith.constant 0 : i32
    %c0_i32_1 = arith.constant 0 : i32
    return %c0_i32, %c0_i32_0 : i32, i32
  }
  func.func @transform_8(%arg0: i32) -> (i32, i32) {
    %c0_i32 = arith.constant 0 : i32
    %c0_i32_0 = arith.constant 0 : i32
    return %arg0, %c0_i32 : i32, i32
  }
}

</mosaic_0001>

<llo_original>
// kernel: tpu_custom_call.1
$region0: #{tpu_custom_call.1}
  #allocation0 [shape = 'u32[]', space=smem, size = 0x4, offset = 0x4, fixed_abs, tag = 'smem constant byte address 0x4 - core index']
  #allocation1 [shape = 'u32[72,128]{1,0:T(1,128)}', space=vmem, size = 0x9000, scoped, tag = 'internal scratch']
  %s0 = inlined_call_operand.hbm [shape: f32[8,32], index: 0, kind: input, shape index: {}]
  %s1 = inlined_call_operand.hbm [shape: bf16[32,384], index: 1, kind: input, shape index: {}]
  %s2 = inlined_call_operand.vmem [shape: bf16[256,256], index: 2, kind: input, shape index: {}]
  %s3 = inlined_call_operand.vmem [shape: bf16[256,64], index: 3, kind: input, shape index: {}]
  %s4 = inlined_call_operand.vmem [shape: bf16[128,64], index: 4, kind: input, shape index: {}]
  %s5 = inlined_call_operand.vmem [shape: bf16[64,64], index: 5, kind: input, shape index: {}]
  %s6 = inlined_call_operand.hbm [shape: bf16[64,128], index: 6, kind: input, shape index: {}]
  %s7 = inlined_call_operand.hbm [shape: f32[8,384], index: 7, kind: input, shape index: {}]
  %s8 = inlined_call_operand.hbm [shape: f32[8,128], index: 8, kind: output, shape index: {}]
  %s9 = sld [smem:[#allocation0]]
  $region58: #{tpu_custom_call.1} parent=0
    _
  %s11 = ssub.s32 1, %s9
  %s12 = scalar_select 0, %s11, %s9
  $region1: #{tpu_custom_call.1} parent=0
    #allocation2 [shape = 'u8[4096]{0}', space=vmem, size = 0x1000, scoped, tag = 'input window, operand 0, single buffered']
    #allocation3 [shape = 's32[1]{0}', space=sflag, size = 0x4, scoped, tag = 'scoped memory for tpu_custom_call.1']
    #allocation4 [shape = 's32[1]{0}', space=sflag, size = 0x4, scoped, tag = 'scoped memory for tpu_custom_call.1']
    #allocation5 [shape = 'u8[24576]{0}', space=vmem, size = 0x6000, scoped, tag = 'input window, operand 1, single buffered']
    #allocation6 [shape = 's32[1]{0}', space=sflag, size = 0x4, scoped, tag = 'scoped memory for tpu_custom_call.1']
    #allocation7 [shape = 'u8[16384]{0}', space=vmem, size = 0x4000, scoped, tag = 'input window, operand 6, single buffered']
    #allocation8 [shape = 'u8[12288]{0}', space=vmem, size = 0x3000, scoped, tag = 'input window, operand 7, single buffered']
    #allocation9 [shape = 's32[1]{0}', space=sflag, size = 0x4, scoped, tag = 'scoped memory for tpu_custom_call.1']
    #allocation10 [shape = 'u8[4096]{0}', space=vmem, size = 0x1000, scoped, tag = 'output window, operand 0, single buffered']
    %13 = vsyncpa [#allocation3], 0
    %14 = vsyncpa [#allocation6], 0
    %15 = vsyncpa [#allocation9], 0
    %16 = vsyncpa [#allocation4], 0
    // Predicated region
    $region2: #{tpu_custom_call.1} parent=1 // pred_check
      _
    $region3: #{tpu_custom_call.1} parent=1 // pred_check_branch
      %18 = sbr.rel (0) target = $region5
    $region4: #{tpu_custom_call.1} parent=1 // pred_region
      %20 = vsyncadd [#allocation3], 0
      %s22 = sshll.u32 %s0, 4
      %s23 = int_to_ptr.hbm [resolvable:$true] %s22
      %s24 = sshll.u32 [#allocation2], 4
      %s25 = int_to_ptr.vmem [resolvable:$true] %s24
      %27 = dma.hbm_to_vmem [thread:$0]  %s23, 128, %s25, [#allocation3]
    $region5: #{tpu_custom_call.1} parent=1 // pred_fallthru
      _
    // Predicated region
    $region6: #{tpu_custom_call.1} parent=1 // pred_check
      _
    $region7: #{tpu_custom_call.1} parent=1 // pred_check_branch
      %29 = sbr.rel (0) target = $region9
    $region8: #{tpu_custom_call.1} parent=1 // pred_region
      %31 = vsyncadd [#allocation6], 0
      %s32 = sshll.u32 %s1, 4
      %s33 = int_to_ptr.hbm [resolvable:$true] %s32
      %s34 = sshll.u32 [#allocation5], 4
      %s35 = int_to_ptr.vmem [resolvable:$true] %s34
      %40 = dma.hbm_to_vmem [thread:$0]  %s33, 768, %s35, [#allocation6], 192, 192, 12
    $region9: #{tpu_custom_call.1} parent=1 // pred_fallthru
      _
    // Predicated region
    $region10: #{tpu_custom_call.1} parent=1 // pred_check
      _
    $region11: #{tpu_custom_call.1} parent=1 // pred_check_branch
      %42 = sbr.rel (0) target = $region13
    $region12: #{tpu_custom_call.1} parent=1 // pred_region
      _
    $region13: #{tpu_custom_call.1} parent=1 // pred_fallthru
      _
    // Predicated region
    $region14: #{tpu_custom_call.1} parent=1 // pred_check
      _
    $region15: #{tpu_custom_call.1} parent=1 // pred_check_branch
      %44 = sbr.rel (0) target = $region17
    $region16: #{tpu_custom_call.1} parent=1 // pred_region
      _
    $region17: #{tpu_custom_call.1} parent=1 // pred_fallthru
      _
    // Predicated region
    $region18: #{tpu_custom_call.1} parent=1 // pred_check
      _
    $region19: #{tpu_custom_call.1} parent=1 // pred_check_branch
      %46 = sbr.rel (0) target = $region21
    $region20: #{tpu_custom_call.1} parent=1 // pred_region
      _
    $region21: #{tpu_custom_call.1} parent=1 // pred_fallthru
      _
    // Predicated region
    $region22: #{tpu_custom_call.1} parent=1 // pred_check
      _
    $region23: #{tpu_custom_call.1} parent=1 // pred_check_branch
      %48 = sbr.rel (0) target = $region25
    $region24: #{tpu_custom_call.1} parent=1 // pred_region
      _
    $region25: #{tpu_custom_call.1} parent=1 // pred_fallthru
      _
    // Predicated region
    $region26: #{tpu_custom_call.1} parent=1 // pred_check
      _
    $region27: #{tpu_custom_call.1} parent=1 // pred_check_branch
      %50 = sbr.rel (0) target = $region29
    $region28: #{tpu_custom_call.1} parent=1 // pred_region
      %52 = vsyncadd [#allocation6], 0
      %s53 = sshll.u32 %s6, 4
      %s54 = int_to_ptr.hbm [resolvable:$true] %s53
      %s55 = sshll.u32 [#allocation7], 4
      %s56 = int_to_ptr.vmem [resolvable:$true] %s55
      %61 = dma.hbm_to_vmem [thread:$0]  %s54, 512, %s56, [#allocation6], 64, 64, 4
    $region29: #{tpu_custom_call.1} parent=1 // pred_fallthru
      _
    // Predicated region
    $region30: #{tpu_custom_call.1} parent=1 // pred_check
      _
    $region31: #{tpu_custom_call.1} parent=1 // pred_check_branch
      %63 = sbr.rel (0) target = $region33
    $region32: #{tpu_custom_call.1} parent=1 // pred_region
      %65 = vsyncadd [#allocation9], 0
      %s67 = sshll.u32 %s7, 4
      %s68 = int_to_ptr.hbm [resolvable:$true] %s67
      %s69 = sshll.u32 [#allocation8], 4
      %s70 = int_to_ptr.vmem [resolvable:$true] %s69
      %72 = dma.hbm_to_vmem [thread:$0]  %s68, 384, %s70, [#allocation9]
    $region33: #{tpu_custom_call.1} parent=1 // pred_fallthru
      _
    // Predicated region
    $region34: #{tpu_custom_call.1} parent=1 // pred_check
      _
    $region35: #{tpu_custom_call.1} parent=1 // pred_check_branch
      %74 = sbr.rel (0) target = $region37
    $region36: #{tpu_custom_call.1} parent=1 // pred_region
      %76 = dma.done [#allocation3], 128
    $region37: #{tpu_custom_call.1} parent=1 // pred_fallthru
      _
    // Predicated region
    $region38: #{tpu_custom_call.1} parent=1 // pred_check
      _
    $region39: #{tpu_custom_call.1} parent=1 // pred_check_branch
      %78 = sbr.rel (0) target = $region41
    $region40: #{tpu_custom_call.1} parent=1 // pred_region
      %80 = dma.done [#allocation6], 768
    $region41: #{tpu_custom_call.1} parent=1 // pred_fallthru
      _
    // Predicated region
    $region42: #{tpu_custom_call.1} parent=1 // pred_check
      _
    $region43: #{tpu_custom_call.1} parent=1 // pred_check_branch
      %82 = sbr.rel (0) target = $region45
    $region44: #{tpu_custom_call.1} parent=1 // pred_region
      %84 = dma.done [#allocation6], 512
    $region45: #{tpu_custom_call.1} parent=1 // pred_fallthru
      _
    // Predicated region
    $region46: #{tpu_custom_call.1} parent=1 // pred_check
      _
    $region47: #{tpu_custom_call.1} parent=1 // pred_check_branch
      %86 = sbr.rel (0) target = $region49
    $region48: #{tpu_custom_call.1} parent=1 // pred_region
      %88 = dma.done [#allocation9], 384
    $region49: #{tpu_custom_call.1} parent=1 // pred_fallthru
      _
    %v90 = vld [vmem:[#allocation2] sm:$0xff]
    %v91 = vpack.c.bf16 %v90, %v90
    %v92 = vld [vmem:[#allocation5] sm:$0xff]
    %v93 = vld [vmem:[#allocation5 + $0x8] sm:$0xf]
    %v94 = vld [vmem:[#allocation5 + $0xc] sm:$0xff]
    %v95 = vld [vmem:[#allocation5 + $0x14] sm:$0xf]
    %v96 = vld [vmem:[#allocation5 + $0x18] sm:$0xff]
    %v97 = vld [vmem:[#allocation5 + $0x20] sm:$0xf]
    %v98 = vld [vmem:[#allocation5 + $0x24] sm:$0xff]
    %v99 = vld [vmem:[#allocation5 + $0x2c] sm:$0xf]
    %v100 = vld [vmem:[#allocation8] ss:$8 sm:$0x7]
    %v102 = vperm.slane %v100, 0
    %v103 = vperm.slane %v100, 1
    %v104 = vperm.slane %v100, 2
    %v116 = vunpack.c.l.b16 %v92
    %v117 = vunpack.c.h.b16 %v92
    %v118 = vunpack.c.l.b16 %v93
    %v119 = vunpack.c.l.b16 %v94
    %v120 = vunpack.c.h.b16 %v94
    %v121 = vunpack.c.l.b16 %v95
    %v122 = vunpack.c.l.b16 %v96
    %v123 = vunpack.c.h.b16 %v96
    %v124 = vunpack.c.l.b16 %v97
    %v125 = vunpack.c.l.b16 %v98
    %v126 = vunpack.c.h.b16 %v98
    %v127 = vunpack.c.l.b16 %v99
    %v128 = vpack.c.b16 %v119, %v116
    %v129 = vpack.c.b16 %v120, %v117
    %v130 = vpack.c.b16 %v121, %v118
    %v131 = vpack.c.b16 %v125, %v122
    %v132 = vpack.c.b16 %v126, %v123
    %v133 = vpack.c.b16 %v127, %v124
    %vm140 = vcmask 261120
    %v142 = vsel %vm140, %v91, 0
    %144 = vmatpush.bf16.msra.mxu0 0
    %145 = vmatpush.bf16.msra.mxu0 0
    %146 = vmatpush.bf16.msra.mxu0 0
    %147 = vmatpush.bf16.msra.mxu0 0
    %148 = vmatpush.bf16.msra.mxu0 0
    %149 = vmatpush.bf16.msra.mxu0 0
    %150 = vmatpush.bf16.msra.mxu0 %v131
    %151 = vmatpush.bf16.msra.mxu0 %v128
    %152 = vmatmul.bf16.gmra.mxu0 %v142
    %v153 = vpop.f32.mrf.mxu0
    %v154 = vadd.f32 %v102, %v153
    %v155 = vpop.f32.mrf.mxu0
    %156 = vdwg.mxu0
    %157 = vmatpush.bf16.msra.mxu0 0
    %158 = vmatpush.bf16.msra.mxu0 0
    %159 = vmatpush.bf16.msra.mxu0 0
    %160 = vmatpush.bf16.msra.mxu0 0
    %161 = vmatpush.bf16.msra.mxu0 0
    %162 = vmatpush.bf16.msra.mxu0 0
    %163 = vmatpush.bf16.msra.mxu0 %v132
    %164 = vmatpush.bf16.msra.mxu0 %v129
    %165 = vmatmul.bf16.gmra.mxu0 %v142
    %v166 = vpop.f32.mrf.mxu0
    %v167 = vadd.f32 %v103, %v166
    %v168 = vpop.f32.mrf.mxu0
    %169 = vdwg.mxu0
    %170 = vmatpush.bf16.msra.mxu0 0
    %171 = vmatpush.bf16.msra.mxu0 0
    %172 = vmatpush.bf16.msra.mxu0 0
    %173 = vmatpush.bf16.msra.mxu0 0
    %174 = vmatpush.bf16.msra.mxu0 0
    %175 = vmatpush.bf16.msra.mxu0 0
    %176 = vmatpush.bf16.msra.mxu0 %v133
    %177 = vmatpush.bf16.msra.mxu0 %v130
    %178 = vmatmul.bf16.gmra.mxu0 %v142
    %v179 = vpop.f32.mrf.mxu0
    %v180 = vadd.f32 %v104, %v179
    %v181 = vpop.f32.mrf.mxu0
    %182 = vdwg.mxu0
    %v183 = vmax.f32 %v154, 0.0
    %v184 = vmax.f32 %v167, 0.0
    %v185 = vmax.f32 %v180, 0.0
    %186 = vrot.lane.b32.xlu0 %v183, 127
    %v187 = vpop.permute.xlu0 %186
    %188 = vrot.lane.b32.xlu0 %v184, 127
    %v189 = vpop.permute.xlu0 %188
    %v190 = vlaneseq
    %v191 = vand.u32 %v190, 127
    %vm192 = vcmp.lt.s32.totalorder %v191, 127
    %v193 = vsel %vm192, %v187, %v189
    %v194 = vsel %vm192, %v189, %v187
    %v195 = vmax.f32 %v183, %v193
    %v196 = vmax.f32 %v184, %v194
    %v197 = vpack.c.bf16 %v195, %v195
    %v198 = vpack.c.bf16 %v196, %v196
    %v199 = vld [vmem:[%s2] sm:$0xff]
    %v200 = vld [vmem:[%s2 + $0x8] sm:$0xff]
    %v201 = vld [vmem:[%s2 + $0x10] sm:$0xff]
    %v202 = vld [vmem:[%s2 + $0x18] sm:$0xff]
    %v203 = vld [vmem:[%s2 + $0x20] sm:$0xff]
    %v204 = vld [vmem:[%s2 + $0x28] sm:$0xff]
    %v205 = vld [vmem:[%s2 + $0x30] sm:$0xff]
    %v206 = vld [vmem:[%s2 + $0x38] sm:$0xff]
    %v207 = vld [vmem:[%s2 + $0x40] sm:$0xff]
    %v208 = vld [vmem:[%s2 + $0x48] sm:$0xff]
    %v209 = vld [vmem:[%s2 + $0x50] sm:$0xff]
    %v210 = vld [vmem:[%s2 + $0x58] sm:$0xff]
    %v211 = vld [vmem:[%s2 + $0x60] sm:$0xff]
    %v212 = vld [vmem:[%s2 + $0x68] sm:$0xff]
    %v213 = vld [vmem:[%s2 + $0x70] sm:$0xff]
    %v214 = vld [vmem:[%s2 + $0x78] sm:$0xff]
    %v215 = vld [vmem:[%s2 + $0x80] sm:$0xff]
    %v216 = vld [vmem:[%s2 + $0x88] sm:$0xff]
    %v217 = vld [vmem:[%s2 + $0x90] sm:$0xff]
    %v218 = vld [vmem:[%s2 + $0x98] sm:$0xff]
    %v219 = vld [vmem:[%s2 + $0xa0] sm:$0xff]
    %v220 = vld [vmem:[%s2 + $0xa8] sm:$0xff]
    %v221 = vld [vmem:[%s2 + $0xb0] sm:$0xff]
    %v222 = vld [vmem:[%s2 + $0xb8] sm:$0xff]
    %v223 = vld [vmem:[%s2 + $0xc0] sm:$0xff]
    %v224 = vld [vmem:[%s2 + $0xc8] sm:$0xff]
    %v225 = vld [vmem:[%s2 + $0xd0] sm:$0xff]
    %v226 = vld [vmem:[%s2 + $0xd8] sm:$0xff]
    %v227 = vld [vmem:[%s2 + $0xe0] sm:$0xff]
    %v228 = vld [vmem:[%s2 + $0xe8] sm:$0xff]
    %v229 = vld [vmem:[%s2 + $0xf0] sm:$0xff]
    %v230 = vld [vmem:[%s2 + $0xf8] sm:$0xff]
    %s231 = scalar_lea.vmem [#allocation8], 1
    %v232 = vld [vmem:[%s231] ss:$8 sm:$0x3]
    %v234 = vperm.slane %v232, 0
    %v235 = vperm.slane %v232, 1
    %v270 = vunpack.c.l.b16 %v199
    %v271 = vunpack.c.h.b16 %v199
    %v272 = vunpack.c.l.b16 %v200
    %v273 = vunpack.c.h.b16 %v200
    %v274 = vunpack.c.l.b16 %v201
    %v275 = vunpack.c.h.b16 %v201
    %v276 = vunpack.c.l.b16 %v202
    %v277 = vunpack.c.h.b16 %v202
    %v278 = vunpack.c.l.b16 %v203
    %v279 = vunpack.c.h.b16 %v203
    %v280 = vunpack.c.l.b16 %v204
    %v281 = vunpack.c.h.b16 %v204
    %v282 = vunpack.c.l.b16 %v205
    %v283 = vunpack.c.h.b16 %v205
    %v284 = vunpack.c.l.b16 %v206
    %v285 = vunpack.c.h.b16 %v206
    %v286 = vunpack.c.l.b16 %v207
    %v287 = vunpack.c.h.b16 %v207
    %v288 = vunpack.c.l.b16 %v208
    %v289 = vunpack.c.h.b16 %v208
    %v290 = vunpack.c.l.b16 %v209
    %v291 = vunpack.c.h.b16 %v209
    %v292 = vunpack.c.l.b16 %v210
    %v293 = vunpack.c.h.b16 %v210
    %v294 = vunpack.c.l.b16 %v211
    %v295 = vunpack.c.h.b16 %v211
    %v296 = vunpack.c.l.b16 %v212
    %v297 = vunpack.c.h.b16 %v212
    %v298 = vunpack.c.l.b16 %v213
    %v299 = vunpack.c.h.b16 %v213
    %v300 = vunpack.c.l.b16 %v214
    %v301 = vunpack.c.h.b16 %v214
    %v302 = vunpack.c.l.b16 %v215
    %v303 = vunpack.c.h.b16 %v215
    %v304 = vunpack.c.l.b16 %v216
    %v305 = vunpack.c.h.b16 %v216
    %v306 = vunpack.c.l.b16 %v217
    %v307 = vunpack.c.h.b16 %v217
    %v308 = vunpack.c.l.b16 %v218
    %v309 = vunpack.c.h.b16 %v218
    %v310 = vunpack.c.l.b16 %v219
    %v311 = vunpack.c.h.b16 %v219
    %v312 = vunpack.c.l.b16 %v220
    %v313 = vunpack.c.h.b16 %v220
    %v314 = vunpack.c.l.b16 %v221
    %v315 = vunpack.c.h.b16 %v221
    %v316 = vunpack.c.l.b16 %v222
    %v317 = vunpack.c.h.b16 %v222
    %v318 = vunpack.c.l.b16 %v223
    %v319 = vunpack.c.h.b16 %v223
    %v320 = vunpack.c.l.b16 %v224
    %v321 = vunpack.c.h.b16 %v224
    %v322 = vunpack.c.l.b16 %v225
    %v323 = vunpack.c.h.b16 %v225
    %v324 = vunpack.c.l.b16 %v226
    %v325 = vunpack.c.h.b16 %v226
    %v326 = vunpack.c.l.b16 %v227
    %v327 = vunpack.c.h.b16 %v227
    %v328 = vunpack.c.l.b16 %v228
    %v329 = vunpack.c.h.b16 %v228
    %v330 = vunpack.c.l.b16 %v229
    %v331 = vunpack.c.h.b16 %v229
    %v332 = vunpack.c.l.b16 %v230
    %v333 = vunpack.c.h.b16 %v230
    %v334 = vpack.c.b16 %v272, %v270
    %v335 = vpack.c.b16 %v273, %v271
    %v336 = vpack.c.b16 %v276, %v274
    %v337 = vpack.c.b16 %v277, %v275
    %v338 = vpack.c.b16 %v280, %v278
    %v339 = vpack.c.b16 %v281, %v279
    %v340 = vpack.c.b16 %v284, %v282
    %v341 = vpack.c.b16 %v285, %v283
    %v342 = vpack.c.b16 %v288, %v286
    %v343 = vpack.c.b16 %v289, %v287
    %v344 = vpack.c.b16 %v292, %v290
    %v345 = vpack.c.b16 %v293, %v291
    %v346 = vpack.c.b16 %v296, %v294
    %v347 = vpack.c.b16 %v297, %v295
    %v348 = vpack.c.b16 %v300, %v298
    %v349 = vpack.c.b16 %v301, %v299
    %v350 = vpack.c.b16 %v304, %v302
    %v351 = vpack.c.b16 %v305, %v303
    %v352 = vpack.c.b16 %v308, %v306
    %v353 = vpack.c.b16 %v309, %v307
    %v354 = vpack.c.b16 %v312, %v310
    %v355 = vpack.c.b16 %v313, %v311
    %v356 = vpack.c.b16 %v316, %v314
    %v357 = vpack.c.b16 %v317, %v315
    %v358 = vpack.c.b16 %v320, %v318
    %v359 = vpack.c.b16 %v321, %v319
    %v360 = vpack.c.b16 %v324, %v322
    %v361 = vpack.c.b16 %v325, %v323
    %v362 = vpack.c.b16 %v328, %v326
    %v363 = vpack.c.b16 %v329, %v327
    %v364 = vpack.c.b16 %v332, %v330
    %v365 = vpack.c.b16 %v333, %v331
    %398 = vmatpush.bf16.msra.mxu0 %v348
    %399 = vmatpush.bf16.msra.mxu0 %v346
    %400 = vmatpush.bf16.msra.mxu0 %v344
    %401 = vmatpush.bf16.msra.mxu0 %v342
    %402 = vmatpush.bf16.msra.mxu0 %v340
    %403 = vmatpush.bf16.msra.mxu0 %v338
    %404 = vmatpush.bf16.msra.mxu0 %v336
    %405 = vmatpush.bf16.msra.mxu0 %v334
    %406 = vmatmul.bf16.gmra.mxu0 %v197
    %v407 = vpop.f32.mrf.mxu0
    %v408 = vadd.f32 %v234, %v407
    %v409 = vpop.f32.mrf.mxu0
    %410 = vdwg.mxu0
    %411 = vmatpush.bf16.msra.mxu0 %v364
    %412 = vmatpush.bf16.msra.mxu0 %v362
    %413 = vmatpush.bf16.msra.mxu0 %v360
    %414 = vmatpush.bf16.msra.mxu0 %v358
    %415 = vmatpush.bf16.msra.mxu0 %v356
    %416 = vmatpush.bf16.msra.mxu0 %v354
    %417 = vmatpush.bf16.msra.mxu0 %v352
    %418 = vmatpush.bf16.msra.mxu0 %v350
    %419 = vmatmul.bf16.gmra.mxu0 %v198
    %v420 = vpop.f32.mrf.mxu0
    %v421 = vadd.f32 %v408, %v420
    %v422 = vpop.f32.mrf.mxu0
    %423 = vdwg.mxu0
    %424 = vmatpush.bf16.msra.mxu0 %v349
    %425 = vmatpush.bf16.msra.mxu0 %v347
    %426 = vmatpush.bf16.msra.mxu0 %v345
    %427 = vmatpush.bf16.msra.mxu0 %v343
    %428 = vmatpush.bf16.msra.mxu0 %v341
    %429 = vmatpush.bf16.msra.mxu0 %v339
    %430 = vmatpush.bf16.msra.mxu0 %v337
    %431 = vmatpush.bf16.msra.mxu0 %v335
    %432 = vmatmul.bf16.gmra.mxu0 %v197
    %v433 = vpop.f32.mrf.mxu0
    %v434 = vadd.f32 %v235, %v433
    %v435 = vpop.f32.mrf.mxu0
    %436 = vdwg.mxu0
    %437 = vmatpush.bf16.msra.mxu0 %v365
    %438 = vmatpush.bf16.msra.mxu0 %v363
    %439 = vmatpush.bf16.msra.mxu0 %v361
    %440 = vmatpush.bf16.msra.mxu0 %v359
    %441 = vmatpush.bf16.msra.mxu0 %v357
    %442 = vmatpush.bf16.msra.mxu0 %v355
    %443 = vmatpush.bf16.msra.mxu0 %v353
    %444 = vmatpush.bf16.msra.mxu0 %v351
    %445 = vmatmul.bf16.gmra.mxu0 %v198
    %v446 = vpop.f32.mrf.mxu0
    %v447 = vadd.f32 %v434, %v446
    %v448 = vpop.f32.mrf.mxu0
    %449 = vdwg.mxu0
    %v450 = vmax.f32 %v421, 0.0
    %v451 = vmax.f32 %v447, 0.0
    %452 = vrot.lane.b32.xlu0 %v450, 127
    %v453 = vpop.permute.xlu0 %452
    %454 = vrot.lane.b32.xlu0 %v451, 127
    %v455 = vpop.permute.xlu0 %454
    %v456 = vsel %vm192, %v453, %v455
    %v457 = vsel %vm192, %v455, %v453
    %v458 = vmax.f32 %v450, %v456
    %v459 = vmax.f32 %v451, %v457
    %v460 = vpack.c.bf16 %v185, %v185
    %v461 = vld [vmem:[%s4] sm:$0xf]
    %v462 = vld [vmem:[%s4 + $0x4] sm:$0xf]
    %v463 = vld [vmem:[%s4 + $0x8] sm:$0xf]
    %v464 = vld [vmem:[%s4 + $0xc] sm:$0xf]
    %v465 = vld [vmem:[%s4 + $0x10] sm:$0xf]
    %v466 = vld [vmem:[%s4 + $0x14] sm:$0xf]
    %v467 = vld [vmem:[%s4 + $0x18] sm:$0xf]
    %v468 = vld [vmem:[%s4 + $0x1c] sm:$0xf]
    %v469 = vld [vmem:[%s4 + $0x20] sm:$0xf]
    %v470 = vld [vmem:[%s4 + $0x24] sm:$0xf]
    %v471 = vld [vmem:[%s4 + $0x28] sm:$0xf]
    %v472 = vld [vmem:[%s4 + $0x2c] sm:$0xf]
    %v473 = vld [vmem:[%s4 + $0x30] sm:$0xf]
    %v474 = vld [vmem:[%s4 + $0x34] sm:$0xf]
    %v475 = vld [vmem:[%s4 + $0x38] sm:$0xf]
    %v476 = vld [vmem:[%s4 + $0x3c] sm:$0xf]
    %v477 = vld [vmem:[#allocation8 + $0x2] ss:$0 sm:$0xff]
    %v494 = vunpack.c.l.b16 %v461
    %v495 = vunpack.c.l.b16 %v462
    %v496 = vunpack.c.l.b16 %v463
    %v497 = vunpack.c.l.b16 %v464
    %v498 = vunpack.c.l.b16 %v465
    %v499 = vunpack.c.l.b16 %v466
    %v500 = vunpack.c.l.b16 %v467
    %v501 = vunpack.c.l.b16 %v468
    %v502 = vunpack.c.l.b16 %v469
    %v503 = vunpack.c.l.b16 %v470
    %v504 = vunpack.c.l.b16 %v471
    %v505 = vunpack.c.l.b16 %v472
    %v506 = vunpack.c.l.b16 %v473
    %v507 = vunpack.c.l.b16 %v474
    %v508 = vunpack.c.l.b16 %v475
    %v509 = vunpack.c.l.b16 %v476
    %v510 = vpack.c.b16 %v495, %v494
    %v511 = vpack.c.b16 %v497, %v496
    %v512 = vpack.c.b16 %v499, %v498
    %v513 = vpack.c.b16 %v501, %v500
    %v514 = vpack.c.b16 %v503, %v502
    %v515 = vpack.c.b16 %v505, %v504
    %v516 = vpack.c.b16 %v507, %v506
    %v517 = vpack.c.b16 %v509, %v508
    %526 = vmatpush.bf16.msra.mxu0 %v517
    %527 = vmatpush.bf16.msra.mxu0 %v516
    %528 = vmatpush.bf16.msra.mxu0 %v515
    %529 = vmatpush.bf16.msra.mxu0 %v514
    %530 = vmatpush.bf16.msra.mxu0 %v513
    %531 = vmatpush.bf16.msra.mxu0 %v512
    %532 = vmatpush.bf16.msra.mxu0 %v511
    %533 = vmatpush.bf16.msra.mxu0 %v510
    %534 = vmatmul.bf16.gmra.mxu0 %v460
    %v535 = vpop.f32.mrf.mxu0
    %v536 = vadd.f32 %v477, %v535
    %v537 = vpop.f32.mrf.mxu0
    %538 = vdwg.mxu0
    %v539 = vmax.f32 %v536, 0.0
    %v540 = vpack.c.bf16 %v458, %v458
    %v541 = vpack.c.bf16 %v459, %v459
    %v542 = vld [vmem:[%s3] sm:$0xf]
    %v543 = vld [vmem:[%s3 + $0x4] sm:$0xf]
    %v544 = vld [vmem:[%s3 + $0x8] sm:$0xf]
    %v545 = vld [vmem:[%s3 + $0xc] sm:$0xf]
    %v546 = vld [vmem:[%s3 + $0x10] sm:$0xf]
    %v547 = vld [vmem:[%s3 + $0x14] sm:$0xf]
    %v548 = vld [vmem:[%s3 + $0x18] sm:$0xf]
    %v549 = vld [vmem:[%s3 + $0x1c] sm:$0xf]
    %v550 = vld [vmem:[%s3 + $0x20] sm:$0xf]
    %v551 = vld [vmem:[%s3 + $0x24] sm:$0xf]
    %v552 = vld [vmem:[%s3 + $0x28] sm:$0xf]
    %v553 = vld [vmem:[%s3 + $0x2c] sm:$0xf]
    %v554 = vld [vmem:[%s3 + $0x30] sm:$0xf]
    %v555 = vld [vmem:[%s3 + $0x34] sm:$0xf]
    %v556 = vld [vmem:[%s3 + $0x38] sm:$0xf]
    %v557 = vld [vmem:[%s3 + $0x3c] sm:$0xf]
    %v558 = vld [vmem:[%s3 + $0x40] sm:$0xf]
    %v559 = vld [vmem:[%s3 + $0x44] sm:$0xf]
    %v560 = vld [vmem:[%s3 + $0x48] sm:$0xf]
    %v561 = vld [vmem:[%s3 + $0x4c] sm:$0xf]
    %v562 = vld [vmem:[%s3 + $0x50] sm:$0xf]
    %v563 = vld [vmem:[%s3 + $0x54] sm:$0xf]
    %v564 = vld [vmem:[%s3 + $0x58] sm:$0xf]
    %v565 = vld [vmem:[%s3 + $0x5c] sm:$0xf]
    %v566 = vld [vmem:[%s3 + $0x60] sm:$0xf]
    %v567 = vld [vmem:[%s3 + $0x64] sm:$0xf]
    %v568 = vld [vmem:[%s3 + $0x68] sm:$0xf]
    %v569 = vld [vmem:[%s3 + $0x6c] sm:$0xf]
    %v570 = vld [vmem:[%s3 + $0x70] sm:$0xf]
    %v571 = vld [vmem:[%s3 + $0x74] sm:$0xf]
    %v572 = vld [vmem:[%s3 + $0x78] sm:$0xf]
    %v573 = vld [vmem:[%s3 + $0x7c] sm:$0xf]
    %v574 = vpack.c.bf16 %v539, %v539
    %v575 = vld [vmem:[%s5] sm:$0xf]
    %v576 = vld [vmem:[%s5 + $0x4] sm:$0xf]
    %v577 = vld [vmem:[%s5 + $0x8] sm:$0xf]
    %v578 = vld [vmem:[%s5 + $0xc] sm:$0xf]
    %v579 = vld [vmem:[%s5 + $0x10] sm:$0xf]
    %v580 = vld [vmem:[%s5 + $0x14] sm:$0xf]
    %v581 = vld [vmem:[%s5 + $0x18] sm:$0xf]
    %v582 = vld [vmem:[%s5 + $0x1c] sm:$0xf]
    %v591 = vunpack.c.l.b16 %v575
    %v592 = vunpack.c.l.b16 %v576
    %v593 = vunpack.c.l.b16 %v577
    %v594 = vunpack.c.l.b16 %v578
    %v595 = vunpack.c.l.b16 %v579
    %v596 = vunpack.c.l.b16 %v580
    %v597 = vunpack.c.l.b16 %v581
    %v598 = vunpack.c.l.b16 %v582
    %v599 = vpack.c.b16 %v592, %v591
    %v600 = vpack.c.b16 %v594, %v593
    %v601 = vpack.c.b16 %v596, %v595
    %v602 = vpack.c.b16 %v598, %v597
    %vm607 = vcmask 523264
    %v609 = vsel %vm607, %v574, 0
    %611 = vmatpush.bf16.msra.mxu0 0
    %612 = vmatpush.bf16.msra.mxu0 0
    %613 = vmatpush.bf16.msra.mxu0 0
    %614 = vmatpush.bf16.msra.mxu0 0
    %615 = vmatpush.bf16.msra.mxu0 %v602
    %616 = vmatpush.bf16.msra.mxu0 %v601
    %617 = vmatpush.bf16.msra.mxu0 %v600
    %618 = vmatpush.bf16.msra.mxu0 %v599
    %619 = vmatmul.bf16.gmra.mxu0 %v609
    %v620 = vpop.f32.mrf.mxu0
    %v621 = vadd.f32 0.0, %v620
    %v622 = vpop.f32.mrf.mxu0
    %623 = vdwg.mxu0
    %v656 = vunpack.c.l.b16 %v542
    %v657 = vunpack.c.l.b16 %v543
    %v658 = vunpack.c.l.b16 %v544
    %v659 = vunpack.c.l.b16 %v545
    %v660 = vunpack.c.l.b16 %v546
    %v661 = vunpack.c.l.b16 %v547
    %v662 = vunpack.c.l.b16 %v548
    %v663 = vunpack.c.l.b16 %v549
    %v664 = vunpack.c.l.b16 %v550
    %v665 = vunpack.c.l.b16 %v551
    %v666 = vunpack.c.l.b16 %v552
    %v667 = vunpack.c.l.b16 %v553
    %v668 = vunpack.c.l.b16 %v554
    %v669 = vunpack.c.l.b16 %v555
    %v670 = vunpack.c.l.b16 %v556
    %v671 = vunpack.c.l.b16 %v557
    %v672 = vunpack.c.l.b16 %v558
    %v673 = vunpack.c.l.b16 %v559
    %v674 = vunpack.c.l.b16 %v560
    %v675 = vunpack.c.l.b16 %v561
    %v676 = vunpack.c.l.b16 %v562
    %v677 = vunpack.c.l.b16 %v563
    %v678 = vunpack.c.l.b16 %v564
    %v679 = vunpack.c.l.b16 %v565
    %v680 = vunpack.c.l.b16 %v566
    %v681 = vunpack.c.l.b16 %v567
    %v682 = vunpack.c.l.b16 %v568
    %v683 = vunpack.c.l.b16 %v569
    %v684 = vunpack.c.l.b16 %v570
    %v685 = vunpack.c.l.b16 %v571
    %v686 = vunpack.c.l.b16 %v572
    %v687 = vunpack.c.l.b16 %v573
    %v688 = vpack.c.b16 %v657, %v656
    %v689 = vpack.c.b16 %v659, %v658
    %v690 = vpack.c.b16 %v661, %v660
    %v691 = vpack.c.b16 %v663, %v662
    %v692 = vpack.c.b16 %v665, %v664
    %v693 = vpack.c.b16 %v667, %v666
    %v694 = vpack.c.b16 %v669, %v668
    %v695 = vpack.c.b16 %v671, %v670
    %v696 = vpack.c.b16 %v673, %v672
    %v697 = vpack.c.b16 %v675, %v674
    %v698 = vpack.c.b16 %v677, %v676
    %v699 = vpack.c.b16 %v679, %v678
    %v700 = vpack.c.b16 %v681, %v680
    %v701 = vpack.c.b16 %v683, %v682
    %v702 = vpack.c.b16 %v685, %v684
    %v703 = vpack.c.b16 %v687, %v686
    %720 = vmatpush.bf16.msra.mxu0 %v695
    %721 = vmatpush.bf16.msra.mxu0 %v694
    %722 = vmatpush.bf16.msra.mxu0 %v693
    %723 = vmatpush.bf16.msra.mxu0 %v692
    %724 = vmatpush.bf16.msra.mxu0 %v691
    %725 = vmatpush.bf16.msra.mxu0 %v690
    %726 = vmatpush.bf16.msra.mxu0 %v689
    %727 = vmatpush.bf16.msra.mxu0 %v688
    %728 = vmatmul.bf16.gmra.mxu0 %v540
    %v729 = vpop.f32.mrf.mxu0
    %v730 = vadd.f32 %v621, %v729
    %v731 = vpop.f32.mrf.mxu0
    %732 = vdwg.mxu0
    %733 = vmatpush.bf16.msra.mxu0 %v703
    %734 = vmatpush.bf16.msra.mxu0 %v702
    %735 = vmatpush.bf16.msra.mxu0 %v701
    %736 = vmatpush.bf16.msra.mxu0 %v700
    %737 = vmatpush.bf16.msra.mxu0 %v699
    %738 = vmatpush.bf16.msra.mxu0 %v698
    %739 = vmatpush.bf16.msra.mxu0 %v697
    %740 = vmatpush.bf16.msra.mxu0 %v696
    %741 = vmatmul.bf16.gmra.mxu0 %v541
    %v742 = vpop.f32.mrf.mxu0
    %v743 = vadd.f32 %v730, %v742
    %v744 = vpop.f32.mrf.mxu0
    %745 = vdwg.mxu0
    %v746 = vld [vmem:[#allocation8 + $0x3] ss:$0 sm:$0xff]
    %v747 = vadd.f32 %v743, %v746
    %v748 = vmax.f32 %v747, 0.0
    %v749 = vpack.c.bf16 %v748, %v748
    %v750 = vld [vmem:[#allocation7] sm:$0xf]
    %v751 = vld [vmem:[#allocation7 + $0x4] sm:$0xf]
    %v752 = vld [vmem:[#allocation7 + $0x8] sm:$0xf]
    %v753 = vld [vmem:[#allocation7 + $0xc] sm:$0xf]
    %v754 = vld [vmem:[#allocation7 + $0x10] sm:$0xf]
    %v755 = vld [vmem:[#allocation7 + $0x14] sm:$0xf]
    %v756 = vld [vmem:[#allocation7 + $0x18] sm:$0xf]
    %v757 = vld [vmem:[#allocation7 + $0x1c] sm:$0xf]
    %v758 = vld [vmem:[#allocation8 + $0x4] ss:$0 sm:$0xff]
    %v767 = vunpack.c.l.b16 %v750
    %v768 = vunpack.c.l.b16 %v751
    %v769 = vunpack.c.l.b16 %v752
    %v770 = vunpack.c.l.b16 %v753
    %v771 = vunpack.c.l.b16 %v754
    %v772 = vunpack.c.l.b16 %v755
    %v773 = vunpack.c.l.b16 %v756
    %v774 = vunpack.c.l.b16 %v757
    %v775 = vpack.c.b16 %v768, %v767
    %v776 = vpack.c.b16 %v770, %v769
    %v777 = vpack.c.b16 %v772, %v771
    %v778 = vpack.c.b16 %v774, %v773
    %v784 = vsel %vm607, %v749, 0
    %786 = vmatpush.bf16.msra.mxu0 0
    %787 = vmatpush.bf16.msra.mxu0 0
    %788 = vmatpush.bf16.msra.mxu0 0
    %789 = vmatpush.bf16.msra.mxu0 0
    %790 = vmatpush.bf16.msra.mxu0 %v778
    %791 = vmatpush.bf16.msra.mxu0 %v777
    %792 = vmatpush.bf16.msra.mxu0 %v776
    %793 = vmatpush.bf16.msra.mxu0 %v775
    %794 = vmatmul.bf16.gmra.mxu0 %v784
    %v795 = vpop.f32.mrf.mxu0
    %v796 = vadd.f32 %v758, %v795
    %v797 = vpop.f32.mrf.mxu0
    %798 = vdwg.mxu0
    %799 = vst [vmem:[#allocation10] sm:$0xff] %v796
    // Predicated region
    $region50: #{tpu_custom_call.1} parent=1 // pred_check
      _
    $region51: #{tpu_custom_call.1} parent=1 // pred_check_branch
      %801 = sbr.rel (0) target = $region53
    $region52: #{tpu_custom_call.1} parent=1 // pred_region
      %803 = vsyncadd [#allocation4], 0
      %s805 = sshll.u32 [#allocation10], 4
      %s806 = int_to_ptr.vmem [resolvable:$true] %s805
      %s807 = sshll.u32 %s8, 4
      %s808 = int_to_ptr.hbm [resolvable:$true] %s807
      %810 = dma.vmem_to_hbm [thread:$0]  %s806, 128, %s808, [#allocation4]
    $region53: #{tpu_custom_call.1} parent=1 // pred_fallthru
      _
    // Predicated region
    $region54: #{tpu_custom_call.1} parent=1 // pred_check
      _
    $region55: #{tpu_custom_call.1} parent=1 // pred_check_branch
      %812 = sbr.rel (0) target = $region57
    $region56: #{tpu_custom_call.1} parent=1 // pred_region
      %814 = dma.done [#allocation4], 128
    $region57: #{tpu_custom_call.1} parent=1 // pred_fallthru
      _
    %815 = vsyncpa [#allocation3], 1
    %816 = vsyncpa [#allocation6], 1
    %817 = vsyncpa [#allocation9], 1
    %818 = vsyncpa [#allocation4], 1

// kernel: tpu_custom_call.1
$region0: #{tpu_custom_call.1}
  #allocation0 [shape = 'u32[]', space=smem, size = 0x4, offset = 0x4, fixed_abs, tag = 'smem constant byte address 0x4 - core index']
  #allocation1 [shape = 'u32[72,128]{1,0:T(1,128)}', space=vmem, size = 0x9000, scoped, tag = 'internal scratch']
  %s0 = inlined_call_operand.hbm [shape: f32[8,32], index: 0, kind: input, shape index: {}]
  %s1 = inlined_call_operand.hbm [shape: bf16[32,384], index: 1, kind: input, shape index: {}]
  %s2 = inlined_call_operand.vmem [shape: bf16[256,256], index: 2, kind: input, shape index: {}]
  %s3 = inlined_call_operand.vmem [shape: bf16[256,64], index: 3, kind: input, shape index: {}]
  %s4 = inlined_call_operand.vmem [shape: bf16[128,64], index: 4, kind: input, shape index: {}]
  %s5 = inlined_call_operand.vmem [shape: bf16[64,64], index: 5, kind: input, shape index: {}]
  %s6 = inlined_call_operand.hbm [shape: bf16[64,128], index: 6, kind: input, shape index: {}]
  %s7 = inlined_call_operand.hbm [shape: f32[8,384], index: 7, kind: input, shape index: {}]
  %s8 = inlined_call_operand.hbm [shape: f32[8,128], index: 8, kind: output, shape index: {}]
  %s9 = sld [smem:[#allocation0]]
  $region58: #{tpu_custom_call.1} parent=0
    _
  %s11 = ssub.s32 1, %s9
  %s12 = scalar_select 0, %s11, %s9
  $region1: #{tpu_custom_call.1} parent=0
    #allocation2 [shape = 'u8[4096]{0}', space=vmem, size = 0x1000, scoped, tag = 'input window, operand 0, single buffered']
    #allocation3 [shape = 's32[1]{0}', space=sflag, size = 0x4, scoped, tag = 'scoped memory for tpu_custom_call.1']
    #allocation4 [shape = 's32[1]{0}', space=sflag, size = 0x4, scoped, tag = 'scoped memory for tpu_custom_call.1']
    #allocation5 [shape = 'u8[24576]{0}', space=vmem, size = 0x6000, scoped, tag = 'input window, operand 1, single buffered']
    #allocation6 [shape = 's32[1]{0}', space=sflag, size = 0x4, scoped, tag = 'scoped memory for tpu_custom_call.1']
    #allocation7 [shape = 'u8[16384]{0}', space=vmem, size = 0x4000, scoped, tag = 'input window, operand 6, single buffered']
    #allocation8 [shape = 'u8[12288]{0}', space=vmem, size = 0x3000, scoped, tag = 'input window, operand 7, single buffered']
    #allocation9 [shape = 's32[1]{0}', space=sflag, size = 0x4, scoped, tag = 'scoped memory for tpu_custom_call.1']
    #allocation10 [shape = 'u8[4096]{0}', space=vmem, size = 0x1000, scoped, tag = 'output window, operand 0, single buffered']
    %13 = vsyncpa [#allocation3], 0
    %14 = vsyncpa [#allocation6], 0
    %15 = vsyncpa [#allocation9], 0
    %16 = vsyncpa [#allocation4], 0
    // Predicated region
    $region2: #{tpu_custom_call.1} parent=1 // pred_check
      _
    $region3: #{tpu_custom_call.1} parent=1 // pred_check_branch
      %18 = sbr.rel (0) target = $region5
    $region4: #{tpu_custom_call.1} parent=1 // pred_region
      %20 = vsyncadd [#allocation3], 0
      %s22 = sshll.u32 %s0, 4
      %s23 = int_to_ptr.hbm [resolvable:$true] %s22
      %s24 = sshll.u32 [#allocation2], 4
      %s25 = int_to_ptr.vmem [resolvable:$true] %s24
      %27 = dma.hbm_to_vmem [thread:$0]  %s23, 128, %s25, [#allocation3]
    $region5: #{tpu_custom_call.1} parent=1 // pred_fallthru
      _
    // Predicated region
    $region6: #{tpu_custom_call.1} parent=1 // pred_check
      _
    $region7: #{tpu_custom_call.1} parent=1 // pred_check_branch
      %29 = sbr.rel (0) target = $region9
    $region8: #{tpu_custom_call.1} parent=1 // pred_region
      %31 = vsyncadd [#allocation6], 0
      %s32 = sshll.u32 %s1, 4
      %s33 = int_to_ptr.hbm [resolvable:$true] %s32
      %s34 = sshll.u32 [#allocation5], 4
      %s35 = int_to_ptr.vmem [resolvable:$true] %s34
      %40 = dma.hbm_to_vmem [thread:$0]  %s33, 768, %s35, [#allocation6], 192, 192, 12
    $region9: #{tpu_custom_call.1} parent=1 // pred_fallthru
      _
    // Predicated region
    $region10: #{tpu_custom_call.1} parent=1 // pred_check
      _
    $region11: #{tpu_custom_call.1} parent=1 // pred_check_branch
      %42 = sbr.rel (0) target = $region13
    $region12: #{tpu_custom_call.1} parent=1 // pred_region
      _
    $region13: #{tpu_custom_call.1} parent=1 // pred_fallthru
      _
    // Predicated region
    $region14: #{tpu_custom_call.1} parent=1 // pred_check
      _
    $region15: #{tpu_custom_call.1} parent=1 // pred_check_branch
      %44 = sbr.rel (0) target = $region17
    $region16: #{tpu_custom_call.1} parent=1 // pred_region
      _
    $region17: #{tpu_custom_call.1} parent=1 // pred_fallthru
      _
    // Predicated region
    $region18: #{tpu_custom_call.1} parent=1 // pred_check
      _
    $region19: #{tpu_custom_call.1} parent=1 // pred_check_branch
      %46 = sbr.rel (0) target = $region21
    $region20: #{tpu_custom_call.1} parent=1 // pred_region
      _
    $region21: #{tpu_custom_call.1} parent=1 // pred_fallthru
      _
    // Predicated region
    $region22: #{tpu_custom_call.1} parent=1 // pred_check
      _
    $region23: #{tpu_custom_call.1} parent=1 // pred_check_branch
      %48 = sbr.rel (0) target = $region25
    $region24: #{tpu_custom_call.1} parent=1 // pred_region
      _
    $region25: #{tpu_custom_call.1} parent=1 // pred_fallthru
      _
    // Predicated region
    $region26: #{tpu_custom_call.1} parent=1 // pred_check
      _
    $region27: #{tpu_custom_call.1} parent=1 // pred_check_branch
      %50 = sbr.rel (0) target = $region29
    $region28: #{tpu_custom_call.1} parent=1 // pred_region
      %52 = vsyncadd [#allocation6], 0
      %s53 = sshll.u32 %s6, 4
      %s54 = int_to_ptr.hbm [resolvable:$true] %s53
      %s55 = sshll.u32 [#allocation7], 4
      %s56 = int_to_ptr.vmem [resolvable:$true] %s55
      %61 = dma.hbm_to_vmem [thread:$0]  %s54, 512, %s56, [#allocation6], 64, 64, 4
    $region29: #{tpu_custom_call.1} parent=1 // pred_fallthru
      _
    // Predicated region
    $region30: #{tpu_custom_call.1} parent=1 // pred_check
      _
    $region31: #{tpu_custom_call.1} parent=1 // pred_check_branch
      %63 = sbr.rel (0) target = $region33
    $region32: #{tpu_custom_call.1} parent=1 // pred_region
      %65 = vsyncadd [#allocation9], 0
      %s67 = sshll.u32 %s7, 4
      %s68 = int_to_ptr.hbm [resolvable:$true] %s67
      %s69 = sshll.u32 [#allocation8], 4
      %s70 = int_to_ptr.vmem [resolvable:$true] %s69
      %72 = dma.hbm_to_vmem [thread:$0]  %s68, 384, %s70, [#allocation9]
    $region33: #{tpu_custom_call.1} parent=1 // pred_fallthru
      _
    // Predicated region
    $region34: #{tpu_custom_call.1} parent=1 // pred_check
      _
    $region35: #{tpu_custom_call.1} parent=1 // pred_check_branch
      %74 = sbr.rel (0) target = $region37
    $region36: #{tpu_custom_call.1} parent=1 // pred_region
      %76 = dma.done [#allocation3], 128
    $region37: #{tpu_custom_call.1} parent=1 // pred_fallthru
      _
    // Predicated region
    $region38: #{tpu_custom_call.1} parent=1 // pred_check
      _
    $region39: #{tpu_custom_call.1} parent=1 // pred_check_branch
      %78 = sbr.rel (0) target = $region41
    $region40: #{tpu_custom_call.1} parent=1 // pred_region
      %80 = dma.done [#allocation6], 768
    $region41: #{tpu_custom_call.1} parent=1 // pred_fallthru
      _
    // Predicated region
    $region42: #{tpu_custom_call.1} parent=1 // pred_check
      _
    $region43: #{tpu_custom_call.1} parent=1 // pred_check_branch
      %82 = sbr.rel (0) target = $region45
    $region44: #{tpu_custom_call.1} parent=1 // pred_region
      %84 = dma.done [#allocation6], 512
    $region45: #{tpu_custom_call.1} parent=1 // pred_fallthru
      _
    // Predicated region
    $region46: #{tpu_custom_call.1} parent=1 // pred_check
      _
    $region47: #{tpu_custom_call.1} parent=1 // pred_check_branch
      %86 = sbr.rel (0) target = $region49
    $region48: #{tpu_custom_call.1} parent=1 // pred_region
      %88 = dma.done [#allocation9], 384
    $region49: #{tpu_custom_call.1} parent=1 // pred_fallthru
      _
    %v90 = vld [vmem:[#allocation2] sm:$0xff]
    %v91 = vpack.c.bf16 %v90, %v90
    %v92 = vld [vmem:[#allocation5] sm:$0xff]
    %v93 = vld [vmem:[#allocation5 + $0x8] sm:$0xf]
    %v94 = vld [vmem:[#allocation5 + $0xc] sm:$0xff]
    %v95 = vld [vmem:[#allocation5 + $0x14] sm:$0xf]
    %v96 = vld [vmem:[#allocation5 + $0x18] sm:$0xff]
    %v97 = vld [vmem:[#allocation5 + $0x20] sm:$0xf]
    %v98 = vld [vmem:[#allocation5 + $0x24] sm:$0xff]
    %v99 = vld [vmem:[#allocation5 + $0x2c] sm:$0xf]
    %v100 = vld [vmem:[#allocation8] ss:$8 sm:$0x7]
    %v102 = vperm.slane %v100, 0
    %v103 = vperm.slane %v100, 1
    %v104 = vperm.slane %v100, 2
    %v116 = vunpack.c.l.b16 %v92
    %v117 = vunpack.c.h.b16 %v92
    %v118 = vunpack.c.l.b16 %v93
    %v119 = vunpack.c.l.b16 %v94
    %v120 = vunpack.c.h.b16 %v94
    %v121 = vunpack.c.l.b16 %v95
    %v122 = vunpack.c.l.b16 %v96
    %v123 = vunpack.c.h.b16 %v96
    %v124 = vunpack.c.l.b16 %v97
    %v125 = vunpack.c.l.b16 %v98
    %v126 = vunpack.c.h.b16 %v98
    %v127 = vunpack.c.l.b16 %v99
    %v128 = vpack.c.b16 %v119, %v116
    %v129 = vpack.c.b16 %v120, %v117
    %v130 = vpack.c.b16 %v121, %v118
    %v131 = vpack.c.b16 %v125, %v122
    %v132 = vpack.c.b16 %v126, %v123
    %v133 = vpack.c.b16 %v127, %v124
    %vm140 = vcmask 261120
    %v142 = vsel %vm140, %v91, 0
    %144 = vmatpush.bf16.msra.mxu0 0
    %145 = vmatpush.bf16.msra.mxu0 0
    %146 = vmatpush.bf16.msra.mxu0 0
    %147 = vmatpush.bf16.msra.mxu0 0
    %148 = vmatpush.bf16.msra.mxu0 0
    %149 = vmatpush.bf16.msra.mxu0 0
    %150 = vmatpush.bf16.msra.mxu0 %v131
    %151 = vmatpush.bf16.msra.mxu0 %v128
    %152 = vmatmul.bf16.gmra.mxu0 %v142
    %v153 = vpop.f32.mrf.mxu0
    %v154 = vadd.f32 %v102, %v153
    %v155 = vpop.f32.mrf.mxu0
    %156 = vdwg.mxu0
    %157 = vmatpush.bf16.msra.mxu0 0
    %158 = vmatpush.bf16.msra.mxu0 0
    %159 = vmatpush.bf16.msra.mxu0 0
    %160 = vmatpush.bf16.msra.mxu0 0
    %161 = vmatpush.bf16.msra.mxu0 0
    %162 = vmatpush.bf16.msra.mxu0 0
    %163 = vmatpush.bf16.msra.mxu0 %v132
    %164 = vmatpush.bf16.msra.mxu0 %v129
    %165 = vmatmul.bf16.gmra.mxu0 %v142
    %v166 = vpop.f32.mrf.mxu0
    %v167 = vadd.f32 %v103, %v166
    %v168 = vpop.f32.mrf.mxu0
    %169 = vdwg.mxu0
    %170 = vmatpush.bf16.msra.mxu0 0
    %171 = vmatpush.bf16.msra.mxu0 0
    %172 = vmatpush.bf16.msra.mxu0 0
    %173 = vmatpush.bf16.msra.mxu0 0
    %174 = vmatpush.bf16.msra.mxu0 0
    %175 = vmatpush.bf16.msra.mxu0 0
    %176 = vmatpush.bf16.msra.mxu0 %v133
    %177 = vmatpush.bf16.msra.mxu0 %v130
    %178 = vmatmul.bf16.gmra.mxu0 %v142
    %v179 = vpop.f32.mrf.mxu0
    %v180 = vadd.f32 %v104, %v179
    %v181 = vpop.f32.mrf.mxu0
    %182 = vdwg.mxu0
    %v183 = vmax.f32 %v154, 0.0
    %v184 = vmax.f32 %v167, 0.0
    %v185 = vmax.f32 %v180, 0.0
    %186 = vrot.lane.b32.xlu0 %v183, 127
    %v187 = vpop.permute.xlu0 %186
    %188 = vrot.lane.b32.xlu0 %v184, 127
    %v189 = vpop.permute.xlu0 %188
    %v190 = vlaneseq
    %v191 = vand.u32 %v190, 127
    %vm192 = vcmp.lt.s32.totalorder %v191, 127
    %v193 = vsel %vm192, %v187, %v189
    %v194 = vsel %vm192, %v189, %v187
    %v195 = vmax.f32 %v183, %v193
    %v196 = vmax.f32 %v184, %v194
    %v197 = vpack.c.bf16 %v195, %v195
    %v198 = vpack.c.bf16 %v196, %v196
    %v199 = vld [vmem:[%s2] sm:$0xff]
    %v200 = vld [vmem:[%s2 + $0x8] sm:$0xff]
    %v201 = vld [vmem:[%s2 + $0x10] sm:$0xff]
    %v202 = vld [vmem:[%s2 + $0x18] sm:$0xff]
    %v203 = vld [vmem:[%s2 + $0x20] sm:$0xff]
    %v204 = vld [vmem:[%s2 + $0x28] sm:$0xff]
    %v205 = vld [vmem:[%s2 + $0x30] sm:$0xff]
    %v206 = vld [vmem:[%s2 + $0x38] sm:$0xff]
    %v207 = vld [vmem:[%s2 + $0x40] sm:$0xff]
    %v208 = vld [vmem:[%s2 + $0x48] sm:$0xff]
    %v209 = vld [vmem:[%s2 + $0x50] sm:$0xff]
    %v210 = vld [vmem:[%s2 + $0x58] sm:$0xff]
    %v211 = vld [vmem:[%s2 + $0x60] sm:$0xff]
    %v212 = vld [vmem:[%s2 + $0x68] sm:$0xff]
    %v213 = vld [vmem:[%s2 + $0x70] sm:$0xff]
    %v214 = vld [vmem:[%s2 + $0x78] sm:$0xff]
    %v215 = vld [vmem:[%s2 + $0x80] sm:$0xff]
    %v216 = vld [vmem:[%s2 + $0x88] sm:$0xff]
    %v217 = vld [vmem:[%s2 + $0x90] sm:$0xff]
    %v218 = vld [vmem:[%s2 + $0x98] sm:$0xff]
    %v219 = vld [vmem:[%s2 + $0xa0] sm:$0xff]
    %v220 = vld [vmem:[%s2 + $0xa8] sm:$0xff]
    %v221 = vld [vmem:[%s2 + $0xb0] sm:$0xff]
    %v222 = vld [vmem:[%s2 + $0xb8] sm:$0xff]
    %v223 = vld [vmem:[%s2 + $0xc0] sm:$0xff]
    %v224 = vld [vmem:[%s2 + $0xc8] sm:$0xff]
    %v225 = vld [vmem:[%s2 + $0xd0] sm:$0xff]
    %v226 = vld [vmem:[%s2 + $0xd8] sm:$0xff]
    %v227 = vld [vmem:[%s2 + $0xe0] sm:$0xff]
    %v228 = vld [vmem:[%s2 + $0xe8] sm:$0xff]
    %v229 = vld [vmem:[%s2 + $0xf0] sm:$0xff]
    %v230 = vld [vmem:[%s2 + $0xf8] sm:$0xff]
    %s231 = scalar_lea.vmem [#allocation8], 1
    %v232 = vld [vmem:[%s231] ss:$8 sm:$0x3]
    %v234 = vperm.slane %v232, 0
    %v235 = vperm.slane %v232, 1
    %v270 = vunpack.c.l.b16 %v199
    %v271 = vunpack.c.h.b16 %v199
    %v272 = vunpack.c.l.b16 %v200
    %v273 = vunpack.c.h.b16 %v200
    %v274 = vunpack.c.l.b16 %v201
    %v275 = vunpack.c.h.b16 %v201
    %v276 = vunpack.c.l.b16 %v202
    %v277 = vunpack.c.h.b16 %v202
    %v278 = vunpack.c.l.b16 %v203
    %v279 = vunpack.c.h.b16 %v203
    %v280 = vunpack.c.l.b16 %v204
    %v281 = vunpack.c.h.b16 %v204
    %v282 = vunpack.c.l.b16 %v205
    %v283 = vunpack.c.h.b16 %v205
    %v284 = vunpack.c.l.b16 %v206
    %v285 = vunpack.c.h.b16 %v206
    %v286 = vunpack.c.l.b16 %v207
    %v287 = vunpack.c.h.b16 %v207
    %v288 = vunpack.c.l.b16 %v208
    %v289 = vunpack.c.h.b16 %v208
    %v290 = vunpack.c.l.b16 %v209
    %v291 = vunpack.c.h.b16 %v209
    %v292 = vunpack.c.l.b16 %v210
    %v293 = vunpack.c.h.b16 %v210
    %v294 = vunpack.c.l.b16 %v211
    %v295 = vunpack.c.h.b16 %v211
    %v296 = vunpack.c.l.b16 %v212
    %v297 = vunpack.c.h.b16 %v212
    %v298 = vunpack.c.l.b16 %v213
    %v299 = vunpack.c.h.b16 %v213
    %v300 = vunpack.c.l.b16 %v214
    %v301 = vunpack.c.h.b16 %v214
    %v302 = vunpack.c.l.b16 %v215
    %v303 = vunpack.c.h.b16 %v215
    %v304 = vunpack.c.l.b16 %v216
    %v305 = vunpack.c.h.b16 %v216
    %v306 = vunpack.c.l.b16 %v217
    %v307 = vunpack.c.h.b16 %v217
    %v308 = vunpack.c.l.b16 %v218
    %v309 = vunpack.c.h.b16 %v218
    %v310 = vunpack.c.l.b16 %v219
    %v311 = vunpack.c.h.b16 %v219
    %v312 = vunpack.c.l.b16 %v220
    %v313 = vunpack.c.h.b16 %v220
    %v314 = vunpack.c.l.b16 %v221
    %v315 = vunpack.c.h.b16 %v221
    %v316 = vunpack.c.l.b16 %v222
    %v317 = vunpack.c.h.b16 %v222
    %v318 = vunpack.c.l.b16 %v223
    %v319 = vunpack.c.h.b16 %v223
    %v320 = vunpack.c.l.b16 %v224
    %v321 = vunpack.c.h.b16 %v224
    %v322 = vunpack.c.l.b16 %v225
    %v323 = vunpack.c.h.b16 %v225
    %v324 = vunpack.c.l.b16 %v226
    %v325 = vunpack.c.h.b16 %v226
    %v326 = vunpack.c.l.b16 %v227
    %v327 = vunpack.c.h.b16 %v227
    %v328 = vunpack.c.l.b16 %v228
    %v329 = vunpack.c.h.b16 %v228
    %v330 = vunpack.c.l.b16 %v229
    %v331 = vunpack.c.h.b16 %v229
    %v332 = vunpack.c.l.b16 %v230
    %v333 = vunpack.c.h.b16 %v230
    %v334 = vpack.c.b16 %v272, %v270
    %v335 = vpack.c.b16 %v273, %v271
    %v336 = vpack.c.b16 %v276, %v274
    %v337 = vpack.c.b16 %v277, %v275
    %v338 = vpack.c.b16 %v280, %v278
    %v339 = vpack.c.b16 %v281, %v279
    %v340 = vpack.c.b16 %v284, %v282
    %v341 = vpack.c.b16 %v285, %v283
    %v342 = vpack.c.b16 %v288, %v286
    %v343 = vpack.c.b16 %v289, %v287
    %v344 = vpack.c.b16 %v292, %v290
    %v345 = vpack.c.b16 %v293, %v291
    %v346 = vpack.c.b16 %v296, %v294
    %v347 = vpack.c.b16 %v297, %v295
    %v348 = vpack.c.b16 %v300, %v298
    %v349 = vpack.c.b16 %v301, %v299
    %v350 = vpack.c.b16 %v304, %v302
    %v351 = vpack.c.b16 %v305, %v303
    %v352 = vpack.c.b16 %v308, %v306
    %v353 = vpack.c.b16 %v309, %v307
    %v354 = vpack.c.b16 %v312, %v310
    %v355 = vpack.c.b16 %v313, %v311
    %v356 = vpack.c.b16 %v316, %v314
    %v357 = vpack.c.b16 %v317, %v315
    %v358 = vpack.c.b16 %v320, %v318
    %v359 = vpack.c.b16 %v321, %v319
    %v360 = vpack.c.b16 %v324, %v322
    %v361 = vpack.c.b16 %v325, %v323
    %v362 = vpack.c.b16 %v328, %v326
    %v363 = vpack.c.b16 %v329, %v327
    %v364 = vpack.c.b16 %v332, %v330
    %v365 = vpack.c.b16 %v333, %v331
    %398 = vmatpush.bf16.msra.mxu0 %v348
    %399 = vmatpush.bf16.msra.mxu0 %v346
    %400 = vmatpush.bf16.msra.mxu0 %v344
    %401 = vmatpush.bf16.msra.mxu0 %v342
    %402 = vmatpush.bf16.msra.mxu0 %v340
    %403 = vmatpush.bf16.msra.mxu0 %v338
    %404 = vmatpush.bf16.msra.mxu0 %v336
    %405 = vmatpush.bf16.msra.mxu0 %v334
    %406 = vmatmul.bf16.gmra.mxu0 %v197
    %v407 = vpop.f32.mrf.mxu0
    %v408 = vadd.f32 %v234, %v407
    %v409 = vpop.f32.mrf.mxu0
    %410 = vdwg.mxu0
    %411 = vmatpush.bf16.msra.mxu0 %v364
    %412 = vmatpush.bf16.msra.mxu0 %v362
    %413 = vmatpush.bf16.msra.mxu0 %v360
    %414 = vmatpush.bf16.msra.mxu0 %v358
    %415 = vmatpush.bf16.msra.mxu0 %v356
    %416 = vmatpush.bf16.msra.mxu0 %v354
    %417 = vmatpush.bf16.msra.mxu0 %v352
    %418 = vmatpush.bf16.msra.mxu0 %v350
    %419 = vmatmul.bf16.gmra.mxu0 %v198
    %v420 = vpop.f32.mrf.mxu0
    %v421 = vadd.f32 %v408, %v420
    %v422 = vpop.f32.mrf.mxu0
    %423 = vdwg.mxu0
    %424 = vmatpush.bf16.msra.mxu0 %v349
    %425 = vmatpush.bf16.msra.mxu0 %v347
    %426 = vmatpush.bf16.msra.mxu0 %v345
    %427 = vmatpush.bf16.msra.mxu0 %v343
    %428 = vmatpush.bf16.msra.mxu0 %v341
    %429 = vmatpush.bf16.msra.mxu0 %v339
    %430 = vmatpush.bf16.msra.mxu0 %v337
    %431 = vmatpush.bf16.msra.mxu0 %v335
    %432 = vmatmul.bf16.gmra.mxu0 %v197
    %v433 = vpop.f32.mrf.mxu0
    %v434 = vadd.f32 %v235, %v433
    %v435 = vpop.f32.mrf.mxu0
    %436 = vdwg.mxu0
    %437 = vmatpush.bf16.msra.mxu0 %v365
    %438 = vmatpush.bf16.msra.mxu0 %v363
    %439 = vmatpush.bf16.msra.mxu0 %v361
    %440 = vmatpush.bf16.msra.mxu0 %v359
    %441 = vmatpush.bf16.msra.mxu0 %v357
    %442 = vmatpush.bf16.msra.mxu0 %v355
    %443 = vmatpush.bf16.msra.mxu0 %v353
    %444 = vmatpush.bf16.msra.mxu0 %v351
    %445 = vmatmul.bf16.gmra.mxu0 %v198
    %v446 = vpop.f32.mrf.mxu0
    %v447 = vadd.f32 %v434, %v446
    %v448 = vpop.f32.mrf.mxu0
    %449 = vdwg.mxu0
    %v450 = vmax.f32 %v421, 0.0
    %v451 = vmax.f32 %v447, 0.0
    %452 = vrot.lane.b32.xlu0 %v450, 127
    %v453 = vpop.permute.xlu0 %452
    %454 = vrot.lane.b32.xlu0 %v451, 127
    %v455 = vpop.permute.xlu0 %454
    %v456 = vsel %vm192, %v453, %v455
    %v457 = vsel %vm192, %v455, %v453
    %v458 = vmax.f32 %v450, %v456
    %v459 = vmax.f32 %v451, %v457
    %v460 = vpack.c.bf16 %v185, %v185
    %v461 = vld [vmem:[%s4] sm:$0xf]
    %v462 = vld [vmem:[%s4 + $0x4] sm:$0xf]
    %v463 = vld [vmem:[%s4 + $0x8] sm:$0xf]
    %v464 = vld [vmem:[%s4 + $0xc] sm:$0xf]
    %v465 = vld [vmem:[%s4 + $0x10] sm:$0xf]
    %v466 = vld [vmem:[%s4 + $0x14] sm:$0xf]
    %v467 = vld [vmem:[%s4 + $0x18] sm:$0xf]
    %v468 = vld [vmem:[%s4 + $0x1c] sm:$0xf]
    %v469 = vld [vmem:[%s4 + $0x20] sm:$0xf]
    %v470 = vld [vmem:[%s4 + $0x24] sm:$0xf]
    %v471 = vld [vmem:[%s4 + $0x28] sm:$0xf]
    %v472 = vld [vmem:[%s4 + $0x2c] sm:$0xf]
    %v473 = vld [vmem:[%s4 + $0x30] sm:$0xf]
    %v474 = vld [vmem:[%s4 + $0x34] sm:$0xf]
    %v475 = vld [vmem:[%s4 + $0x38] sm:$0xf]
    %v476 = vld [vmem:[%s4 + $0x3c] sm:$0xf]
    %v477 = vld [vmem:[#allocation8 + $0x2] ss:$0 sm:$0xff]
    %v494 = vunpack.c.l.b16 %v461
    %v495 = vunpack.c.l.b16 %v462
    %v496 = vunpack.c.l.b16 %v463
    %v497 = vunpack.c.l.b16 %v464
    %v498 = vunpack.c.l.b16 %v465
    %v499 = vunpack.c.l.b16 %v466
    %v500 = vunpack.c.l.b16 %v467
    %v501 = vunpack.c.l.b16 %v468
    %v502 = vunpack.c.l.b16 %v469
    %v503 = vunpack.c.l.b16 %v470
    %v504 = vunpack.c.l.b16 %v471
    %v505 = vunpack.c.l.b16 %v472
    %v506 = vunpack.c.l.b16 %v473
    %v507 = vunpack.c.l.b16 %v474
    %v508 = vunpack.c.l.b16 %v475
    %v509 = vunpack.c.l.b16 %v476
    %v510 = vpack.c.b16 %v495, %v494
    %v511 = vpack.c.b16 %v497, %v496
    %v512 = vpack.c.b16 %v499, %v498
    %v513 = vpack.c.b16 %v501, %v500
    %v514 = vpack.c.b16 %v503, %v502
    %v515 = vpack.c.b16 %v505, %v504
    %v516 = vpack.c.b16 %v507, %v506
    %v517 = vpack.c.b16 %v509, %v508
    %526 = vmatpush.bf16.msra.mxu0 %v517
    %527 = vmatpush.bf16.msra.mxu0 %v516
    %528 = vmatpush.bf16.msra.mxu0 %v515
    %529 = vmatpush.bf16.msra.mxu0 %v514
    %530 = vmatpush.bf16.msra.mxu0 %v513
    %531 = vmatpush.bf16.msra.mxu0 %v512
    %532 = vmatpush.bf16.msra.mxu0 %v511
    %533 = vmatpush.bf16.msra.mxu0 %v510
    %534 = vmatmul.bf16.gmra.mxu0 %v460
    %v535 = vpop.f32.mrf.mxu0
    %v536 = vadd.f32 %v477, %v535
    %v537 = vpop.f32.mrf.mxu0
    %538 = vdwg.mxu0
    %v539 = vmax.f32 %v536, 0.0
    %v540 = vpack.c.bf16 %v458, %v458
    %v541 = vpack.c.bf16 %v459, %v459
    %v542 = vld [vmem:[%s3] sm:$0xf]
    %v543 = vld [vmem:[%s3 + $0x4] sm:$0xf]
    %v544 = vld [vmem:[%s3 + $0x8] sm:$0xf]
    %v545 = vld [vmem:[%s3 + $0xc] sm:$0xf]
    %v546 = vld [vmem:[%s3 + $0x10] sm:$0xf]
    %v547 = vld [vmem:[%s3 + $0x14] sm:$0xf]
    %v548 = vld [vmem:[%s3 + $0x18] sm:$0xf]
    %v549 = vld [vmem:[%s3 + $0x1c] sm:$0xf]
    %v550 = vld [vmem:[%s3 + $0x20] sm:$0xf]
    %v551 = vld [vmem:[%s3 + $0x24] sm:$0xf]
    %v552 = vld [vmem:[%s3 + $0x28] sm:$0xf]
    %v553 = vld [vmem:[%s3 + $0x2c] sm:$0xf]
    %v554 = vld [vmem:[%s3 + $0x30] sm:$0xf]
    %v555 = vld [vmem:[%s3 + $0x34] sm:$0xf]
    %v556 = vld [vmem:[%s3 + $0x38] sm:$0xf]
    %v557 = vld [vmem:[%s3 + $0x3c] sm:$0xf]
    %v558 = vld [vmem:[%s3 + $0x40] sm:$0xf]
    %v559 = vld [vmem:[%s3 + $0x44] sm:$0xf]
    %v560 = vld [vmem:[%s3 + $0x48] sm:$0xf]
    %v561 = vld [vmem:[%s3 + $0x4c] sm:$0xf]
    %v562 = vld [vmem:[%s3 + $0x50] sm:$0xf]
    %v563 = vld [vmem:[%s3 + $0x54] sm:$0xf]
    %v564 = vld [vmem:[%s3 + $0x58] sm:$0xf]
    %v565 = vld [vmem:[%s3 + $0x5c] sm:$0xf]
    %v566 = vld [vmem:[%s3 + $0x60] sm:$0xf]
    %v567 = vld [vmem:[%s3 + $0x64] sm:$0xf]
    %v568 = vld [vmem:[%s3 + $0x68] sm:$0xf]
    %v569 = vld [vmem:[%s3 + $0x6c] sm:$0xf]
    %v570 = vld [vmem:[%s3 + $0x70] sm:$0xf]
    %v571 = vld [vmem:[%s3 + $0x74] sm:$0xf]
    %v572 = vld [vmem:[%s3 + $0x78] sm:$0xf]
    %v573 = vld [vmem:[%s3 + $0x7c] sm:$0xf]
    %v574 = vpack.c.bf16 %v539, %v539
    %v575 = vld [vmem:[%s5] sm:$0xf]
    %v576 = vld [vmem:[%s5 + $0x4] sm:$0xf]
    %v577 = vld [vmem:[%s5 + $0x8] sm:$0xf]
    %v578 = vld [vmem:[%s5 + $0xc] sm:$0xf]
    %v579 = vld [vmem:[%s5 + $0x10] sm:$0xf]
    %v580 = vld [vmem:[%s5 + $0x14] sm:$0xf]
    %v581 = vld [vmem:[%s5 + $0x18] sm:$0xf]
    %v582 = vld [vmem:[%s5 + $0x1c] sm:$0xf]
    %v591 = vunpack.c.l.b16 %v575
    %v592 = vunpack.c.l.b16 %v576
    %v593 = vunpack.c.l.b16 %v577
    %v594 = vunpack.c.l.b16 %v578
    %v595 = vunpack.c.l.b16 %v579
    %v596 = vunpack.c.l.b16 %v580
    %v597 = vunpack.c.l.b16 %v581
    %v598 = vunpack.c.l.b16 %v582
    %v599 = vpack.c.b16 %v592, %v591
    %v600 = vpack.c.b16 %v594, %v593
    %v601 = vpack.c.b16 %v596, %v595
    %v602 = vpack.c.b16 %v598, %v597
    %vm607 = vcmask 523264
    %v609 = vsel %vm607, %v574, 0
    %611 = vmatpush.bf16.msra.mxu0 0
    %612 = vmatpush.bf16.msra.mxu0 0
    %613 = vmatpush.bf16.msra.mxu0 0
    %614 = vmatpush.bf16.msra.mxu0 0
    %615 = vmatpush.bf16.msra.mxu0 %v602
    %616 = vmatpush.bf16.msra.mxu0 %v601
    %617 = vmatpush.bf16.msra.mxu0 %v600
    %618 = vmatpush.bf16.msra.mxu0 %v599
    %619 = vmatmul.bf16.gmra.mxu0 %v609
    %v620 = vpop.f32.mrf.mxu0
    %v621 = vadd.f32 0.0, %v620
    %v622 = vpop.f32.mrf.mxu0
    %623 = vdwg.mxu0
    %v656 = vunpack.c.l.b16 %v542
    %v657 = vunpack.c.l.b16 %v543
    %v658 = vunpack.c.l.b16 %v544
    %v659 = vunpack.c.l.b16 %v545
    %v660 = vunpack.c.l.b16 %v546
    %v661 = vunpack.c.l.b16 %v547
    %v662 = vunpack.c.l.b16 %v548
    %v663 = vunpack.c.l.b16 %v549
    %v664 = vunpack.c.l.b16 %v550
    %v665 = vunpack.c.l.b16 %v551
    %v666 = vunpack.c.l.b16 %v552
    %v667 = vunpack.c.l.b16 %v553
    %v668 = vunpack.c.l.b16 %v554
    %v669 = vunpack.c.l.b16 %v555
    %v670 = vunpack.c.l.b16 %v556
    %v671 = vunpack.c.l.b16 %v557
    %v672 = vunpack.c.l.b16 %v558
    %v673 = vunpack.c.l.b16 %v559
    %v674 = vunpack.c.l.b16 %v560
    %v675 = vunpack.c.l.b16 %v561
    %v676 = vunpack.c.l.b16 %v562
    %v677 = vunpack.c.l.b16 %v563
    %v678 = vunpack.c.l.b16 %v564
    %v679 = vunpack.c.l.b16 %v565
    %v680 = vunpack.c.l.b16 %v566
    %v681 = vunpack.c.l.b16 %v567
    %v682 = vunpack.c.l.b16 %v568
    %v683 = vunpack.c.l.b16 %v569
    %v684 = vunpack.c.l.b16 %v570
    %v685 = vunpack.c.l.b16 %v571
    %v686 = vunpack.c.l.b16 %v572
    %v687 = vunpack.c.l.b16 %v573
    %v688 = vpack.c.b16 %v657, %v656
    %v689 = vpack.c.b16 %v659, %v658
    %v690 = vpack.c.b16 %v661, %v660
    %v691 = vpack.c.b16 %v663, %v662
    %v692 = vpack.c.b16 %v665, %v664
    %v693 = vpack.c.b16 %v667, %v666
    %v694 = vpack.c.b16 %v669, %v668
    %v695 = vpack.c.b16 %v671, %v670
    %v696 = vpack.c.b16 %v673, %v672
    %v697 = vpack.c.b16 %v675, %v674
    %v698 = vpack.c.b16 %v677, %v676
    %v699 = vpack.c.b16 %v679, %v678
    %v700 = vpack.c.b16 %v681, %v680
    %v701 = vpack.c.b16 %v683, %v682
    %v702 = vpack.c.b16 %v685, %v684
    %v703 = vpack.c.b16 %v687, %v686
    %720 = vmatpush.bf16.msra.mxu0 %v695
    %721 = vmatpush.bf16.msra.mxu0 %v694
    %722 = vmatpush.bf16.msra.mxu0 %v693
    %723 = vmatpush.bf16.msra.mxu0 %v692
    %724 = vmatpush.bf16.msra.mxu0 %v691
    %725 = vmatpush.bf16.msra.mxu0 %v690
    %726 = vmatpush.bf16.msra.mxu0 %v689
    %727 = vmatpush.bf16.msra.mxu0 %v688
    %728 = vmatmul.bf16.gmra.mxu0 %v540
    %v729 = vpop.f32.mrf.mxu0
    %v730 = vadd.f32 %v621, %v729
    %v731 = vpop.f32.mrf.mxu0
    %732 = vdwg.mxu0
    %733 = vmatpush.bf16.msra.mxu0 %v703
    %734 = vmatpush.bf16.msra.mxu0 %v702
    %735 = vmatpush.bf16.msra.mxu0 %v701
    %736 = vmatpush.bf16.msra.mxu0 %v700
    %737 = vmatpush.bf16.msra.mxu0 %v699
    %738 = vmatpush.bf16.msra.mxu0 %v698
    %739 = vmatpush.bf16.msra.mxu0 %v697
    %740 = vmatpush.bf16.msra.mxu0 %v696
    %741 = vmatmul.bf16.gmra.mxu0 %v541
    %v742 = vpop.f32.mrf.mxu0
    %v743 = vadd.f32 %v730, %v742
    %v744 = vpop.f32.mrf.mxu0
    %745 = vdwg.mxu0
    %v746 = vld [vmem:[#allocation8 + $0x3] ss:$0 sm:$0xff]
    %v747 = vadd.f32 %v743, %v746
    %v748 = vmax.f32 %v747, 0.0
    %v749 = vpack.c.bf16 %v748, %v748
    %v750 = vld [vmem:[#allocation7] sm:$0xf]
    %v751 = vld [vmem:[#allocation7 + $0x4] sm:$0xf]
    %v752 = vld [vmem:[#allocation7 + $0x8] sm:$0xf]
    %v753 = vld [vmem:[#allocation7 + $0xc] sm:$0xf]
    %v754 = vld [vmem:[#allocation7 + $0x10] sm:$0xf]
    %v755 = vld [vmem:[#allocation7 + $0x14] sm:$0xf]
    %v756 = vld [vmem:[#allocation7 + $0x18] sm:$0xf]
    %v757 = vld [vmem:[#allocation7 + $0x1c] sm:$0xf]
    %v758 = vld [vmem:[#allocation8 + $0x4] ss:$0 sm:$0xff]
    %v767 = vunpack.c.l.b16 %v750
    %v768 = vunpack.c.l.b16 %v751
    %v769 = vunpack.c.l.b16 %v752
    %v770 = vunpack.c.l.b16 %v753
    %v771 = vunpack.c.l.b16 %v754
    %v772 = vunpack.c.l.b16 %v755
    %v773 = vunpack.c.l.b16 %v756
    %v774 = vunpack.c.l.b16 %v757
    %v775 = vpack.c.b16 %v768, %v767
    %v776 = vpack.c.b16 %v770, %v769
    %v777 = vpack.c.b16 %v772, %v771
    %v778 = vpack.c.b16 %v774, %v773
    %v784 = vsel %vm607, %v749, 0
    %786 = vmatpush.bf16.msra.mxu0 0
    %787 = vmatpush.bf16.msra.mxu0 0
    %788 = vmatpush.bf16.msra.mxu0 0
    %789 = vmatpush.bf16.msra.mxu0 0
    %790 = vmatpush.bf16.msra.mxu0 %v778
    %791 = vmatpush.bf16.msra.mxu0 %v777
    %792 = vmatpush.bf16.msra.mxu0 %v776
    %793 = vmatpush.bf16.msra.mxu0 %v775
    %794 = vmatmul.bf16.gmra.mxu0 %v784
    %v795 = vpop.f32.mrf.mxu0
    %v796 = vadd.f32 %v758, %v795
    %v797 = vpop.f32.mrf.mxu0
    %798 = vdwg.mxu0
    %799 = vst [vmem:[#allocation10] sm:$0xff] %v796
    // Predicated region
    $region50: #{tpu_custom_call.1} parent=1 // pred_check
      _
    $region51: #{tpu_custom_call.1} parent=1 // pred_check_branch
      %801 = sbr.rel (0) target = $region53
    $region52: #{tpu_custom_call.1} parent=1 // pred_region
      %803 = vsyncadd [#allocation4], 0
      %s805 = sshll.u32 [#allocation10], 4
      %s806 = int_to_ptr.vmem [resolvable:$true] %s805
      %s807 = sshll.u32 %s8, 4
      %s808 = int_to_ptr.hbm [resolvable:$true] %s807
      %810 = dma.vmem_to_hbm [thread:$0]  %s806, 128, %s808, [#allocation4]
    $region53: #{tpu_custom_call.1} parent=1 // pred_fallthru
      _
    // Predicated region
    $region54: #{tpu_custom_call.1} parent=1 // pred_check
      _
    $region55: #{tpu_custom_call.1} parent=1 // pred_check_branch
      %812 = sbr.rel (0) target = $region57
    $region56: #{tpu_custom_call.1} parent=1 // pred_region
      %814 = dma.done [#allocation4], 128
    $region57: #{tpu_custom_call.1} parent=1 // pred_fallthru
      _
    %815 = vsyncpa [#allocation3], 1
    %816 = vsyncpa [#allocation6], 1
    %817 = vsyncpa [#allocation9], 1
    %818 = vsyncpa [#allocation4], 1

</llo_original>
